<compile_context>
chip_gen: v5e
topology: v5e:2x2
jax: 0.10.0
libtpu: 0.0.40
codegen_flags: <defaults>
</compile_context>

<pallas_src>
import functools

import jax
import jax.numpy as jnp
from jax import lax
from jax.experimental import pallas as pl
from jax.experimental.pallas import tpu as pltpu

EPS = 1e-5


def _round_up(x, m):
    return (x + m - 1) // m * m


def _tpu_vmem_limit_bytes():
    """Generation-aware scoped-VMEM budget: ~96 MiB on 128-MiB chips (v5e/v6e),
    ~48 MiB on 64-MiB-per-core chips (v7x)."""
    cap = 64 * 1024 * 1024  # conservative default = v7x per-core VMEM
    try:
        info = pltpu.get_tpu_info()
        c = getattr(info, "vmem_capacity_bytes", None)
        if c:
            cap = int(c)
    except Exception:
        pass
    return int(min(cap * 3 // 4, 96 * 1024 * 1024))


VMEM_LIMIT = _tpu_vmem_limit_bytes()


def _choose_tm(M, K_pad, Cout_pad, vmem_limit):
    """Pick the M tile: multiple of 16 (bf16 sublanes), as large as the VMEM budget allows,
    but keep at least 2 M tiles on the 'parallel' axis for v7x's dual TensorCores."""
    per_row = 2 * (K_pad * 2 + Cout_pad * 2)              # double-buffered bf16 patch + y rows
    fixed = 2 * (K_pad * Cout_pad * 2) + 2 * (8 * Cout_pad * 4) + (2 << 20)
    tm_cap = max(16, (vmem_limit - fixed) // per_row)
    tm_cap = max(16, (tm_cap // 16) * 16)
    tm_target = 1024 if vmem_limit >= 64 * 1024 * 1024 else 512
    tm = min(tm_target, tm_cap, _round_up(M, 16))
    if M <= tm and M > 16:
        tm = max(16, _round_up((M + 1) // 2, 16))         # force nm >= 2 when feasible
    return max(tm, 16)


# ---------------------------------------------------------------------------
# Pass 1: one full-K matmul per M tile + per-tile partial BN statistics
#   p:(tm,K_pad) bf16   w:(K_pad,Cp) bf16 (VMEM-resident)   y:(tm,Cp) bf16   stats:(8,Cp) f32
# ---------------------------------------------------------------------------
def _conv_stats_kernel(p_ref, w_ref, y_ref, stats_ref):
    acc = jnp.dot(p_ref[...], w_ref[...], preferred_element_type=jnp.float32)
    y_ref[...] = acc.astype(y_ref.dtype)
    # per-tile partial sums (row 0) and sums-of-squares (row 1), per channel,
    # written with one unmasked full-tile store.
    s1 = jnp.sum(acc, axis=0, keepdims=True)
    s2 = jnp.sum(acc * acc, axis=0, keepdims=True)
    row = lax.broadcasted_iota(jnp.int32, stats_ref.shape, 0)
    stats_ref[...] = jnp.where(row == 0, s1, jnp.where(row == 1, s2, 0.0))


# ---------------------------------------------------------------------------
# Pass 2: BN apply (+ optional post-ReLU, + optional fused residual add)
#   y:(tm,Cp) bf16   scale,shift:(1,Cp) f32   [r:(tm,Cp)]   o:(tm,Cp)
# ---------------------------------------------------------------------------
def _bn_apply_kernel(*refs, post_relu, has_residual):
    if has_residual:
        y_ref, scale_ref, shift_ref, r_ref, o_ref = refs
    else:
        y_ref, scale_ref, shift_ref, o_ref = refs
        r_ref = None

    v = y_ref[...].astype(jnp.float32) * scale_ref[...] + shift_ref[...]
    if post_relu:
        v = jnp.maximum(v, 0.0)
    if has_residual:
        v = v + r_ref[...].astype(jnp.float32)
    o_ref[...] = v.astype(o_ref.dtype)


def conv3x3_bn(x_nhwc, w_hwio, gamma, beta, *, stride=(1, 1), pre_relu=False,
               post_relu=False, residual=None, out_dtype=jnp.float32):
    """3x3 conv (padding=1, no bias) + training-mode BatchNorm (+ optional ReLUs/residual)."""
    N, H, W, Cin = x_nhwc.shape
    _, _, _, Cout = w_hwio.shape
    sh, sw = stride
    Ho = (H + 2 - 3) // sh + 1
    Wo = (W + 2 - 3) // sw + 1
    M = N * Ho * Wo
    K = 9 * Cin

    # pre-ReLU applied once on x (1x data) rather than on the 9x patch copies
    x = jnp.maximum(x_nhwc, 0.0) if pre_relu else x_nhwc
    xb = x.astype(jnp.bfloat16)  # bf16 MXU operands, halves patch HBM traffic

    # TODO(synk): replace host-side im2col with in-kernel halo-DMA (memory_space=pl.ANY +
    # make_async_copy) and 9 shifted accumulating dots to avoid ~9x activation materialization.
    xp = jnp.pad(xb, ((0, 0), (1, 1), (1, 1), (0, 0)))
    cols = []
    for dy in range(3):
        for dx in range(3):
            cols.append(
                xp[:, dy:dy + sh * (Ho - 1) + 1:sh, dx:dx + sw * (Wo - 1) + 1:sw, :])
    patches = jnp.stack(cols, axis=3).reshape(M, K)

    # lane/sublane-dense tiling: pad Cout and K to multiples of 128 only (<=127 slop)
    Cout_pad = _round_up(Cout, 128)
    K_pad = _round_up(K, 128)
    # TODO(synk): Cout_pad==128 half-fills the 256-wide MXU on v6e/v7x; could pack 2 M tiles
    # per step when such a layer is MXU-bound.

    # Full weight stays VMEM-resident (true for all ResNet BasicBlock layers).
    assert 2 * K_pad * Cout_pad * 2 <= VMEM_LIMIT // 2, (
        "TODO(synk): add a K-gridded fallback when the full weight does not fit VMEM")

    tm = _choose_tm(M, K_pad, Cout_pad, VMEM_LIMIT)
    M_pad = _round_up(M, tm)
    nm = M_pad // tm

    patches = jnp.pad(patches, ((0, M_pad - M), (0, K_pad - K)))
    wmat = jnp.pad(w_hwio.reshape(K, Cout).astype(jnp.bfloat16),
                   ((0, K_pad - K), (0, Cout_pad - Cout)))

    # ---- pass 1: conv matmul + partial stats -------------------------------
    bytes_p1 = (M_pad * K_pad * 2 + K_pad * Cout_pad * 2
                + M_pad * Cout_pad * 2 + nm * 8 * Cout_pad * 4)
    y, stats = pl.pallas_call(
        _conv_stats_kernel,
        grid_spec=pltpu.PrefetchScalarGridSpec(
            num_scalar_prefetch=0,
            grid=(nm,),
            in_specs=[
                pl.BlockSpec((tm, K_pad), lambda i: (i, 0)),
                pl.BlockSpec((K_pad, Cout_pad), lambda i: (0, 0)),   # VMEM-resident weight
            ],
            out_specs=[
                pl.BlockSpec((tm, Cout_pad), lambda i: (i, 0)),
                pl.BlockSpec((8, Cout_pad), lambda i: (i, 0)),
            ]),
        out_shape=(jax.ShapeDtypeStruct((M_pad, Cout_pad), jnp.bfloat16),
                   jax.ShapeDtypeStruct((nm * 8, Cout_pad), jnp.float32)),
        compiler_params=pltpu.CompilerParams(
            dimension_semantics=("parallel",),
            vmem_limit_bytes=VMEM_LIMIT),
        cost_estimate=pl.CostEstimate(flops=2 * M_pad * K_pad * Cout_pad,
                                      transcendentals=0,
                                      bytes_accessed=bytes_p1),
    )(patches, wmat)

    # ---- glue: fold partial sums -> batch stats -> per-channel scale/shift --
    # (padded M rows and padded K columns contribute exactly zero to the sums)
    stats = stats.reshape(nm, 8, Cout_pad)
    s1 = jnp.sum(stats[:, 0, :], axis=0)
    s2 = jnp.sum(stats[:, 1, :], axis=0)
    mu = s1 / M
    # NOTE: E[x^2]-E[x]^2 in f32 can cancel when |mu| >> std; conv outputs here have
    # |mu|/std ~ O(1) so f32 is ample. TODO(synk): mean-shifted per-tile sums if needed.
    var = jnp.maximum(s2 / M - mu * mu, 0.0)
    g_pad = jnp.pad(gamma.astype(jnp.float32), (0, Cout_pad - Cout))
    b_pad = jnp.pad(beta.astype(jnp.float32), (0, Cout_pad - Cout))
    scale_v = g_pad * lax.rsqrt(var + EPS)
    shift_v = b_pad - mu * scale_v
    scale = scale_v.reshape(1, Cout_pad)
    shift = shift_v.reshape(1, Cout_pad)

    # ---- pass 2: normalize (+ReLU) (+residual) ------------------------------
    args = [y, scale, shift]
    in_specs = [
        pl.BlockSpec((tm, Cout_pad), lambda i: (i, 0)),
        pl.BlockSpec((1, Cout_pad), lambda i: (0, 0)),   # VMEM-resident across M
        pl.BlockSpec((1, Cout_pad), lambda i: (0, 0)),
    ]
    res_bytes = 0
    if residual is not None:
        # keep residual in its native dtype (bf16 projection shortcut / f32 identity)
        r = residual.reshape(M, Cout)
        r = jnp.pad(r, ((0, M_pad - M), (0, Cout_pad - Cout)))
        args.append(r)
        in_specs.append(pl.BlockSpec((tm, Cout_pad), lambda i: (i, 0)))
        res_bytes = M_pad * Cout_pad * r.dtype.itemsize

    kernel = functools.partial(_bn_apply_kernel, post_relu=post_relu,
                               has_residual=residual is not None)
    bytes_p2 = (M_pad * Cout_pad * 2 + 2 * Cout_pad * 4 + res_bytes
                + M_pad * Cout_pad * jnp.dtype(out_dtype).itemsize)
    out = pl.pallas_call(
        kernel,
        grid_spec=pltpu.PrefetchScalarGridSpec(
            num_scalar_prefetch=0,
            grid=(nm,),
            in_specs=in_specs,
            out_specs=pl.BlockSpec((tm, Cout_pad), lambda i: (i, 0))),
        out_shape=jax.ShapeDtypeStruct((M_pad, Cout_pad), out_dtype),
        compiler_params=pltpu.CompilerParams(
            dimension_semantics=("parallel",),
            vmem_limit_bytes=VMEM_LIMIT),
        cost_estimate=pl.CostEstimate(flops=3 * M_pad * Cout_pad,
                                      transcendentals=0,
                                      bytes_accessed=bytes_p2),
    )(*args)

    return out[:M, :Cout].reshape(N, Ho, Wo, Cout)


# ---------------------------------------------------------------------------
# Parameters + block forward
# ---------------------------------------------------------------------------
def init_basic_block(key, in_channels, out_channels, strides=(1, 1)):
    """Deterministic parameter init. Conv weights stored HWIO
    (== PyTorch (Cout,Cin,3,3) transposed to (3,3,Cin,Cout))."""
    ks = jax.random.split(key, 9)

    def conv_w(k, cin, cout):
        return 0.1 * jax.random.normal(k, (3, 3, cin, cout), jnp.float32)

    def bn_gb(kg, kb, c):
        return (1.0 + 0.1 * jax.random.normal(kg, (c,), jnp.float32),
                0.1 * jax.random.normal(kb, (c,), jnp.float32))

    g1, b1 = bn_gb(ks[1], ks[2], out_channels)
    g2, b2 = bn_gb(ks[4], ks[5], out_channels)
    params = {
        'w1': conv_w(ks[0], in_channels, out_channels), 'g1': g1, 'b1': b1,
        'w2': conv_w(ks[3], out_channels, out_channels), 'g2': g2, 'b2': b2,
    }
    identity = (strides == (1, 1)) and (in_channels == out_channels)
    if not identity:
        gs, bs = bn_gb(ks[7], ks[8], out_channels)
        params['ws'] = conv_w(ks[6], in_channels, out_channels)
        params['gs'], params['bs'] = gs, bs
    return params, identity


@functools.partial(jax.jit, static_argnums=(2, 3))
def basic_block_forward(x_nchw, params, strides, identity):
    x = jnp.transpose(x_nchw, (0, 2, 3, 1))  # NCHW -> NHWC
    if identity:
        sc = x  # identity shortcut stays f32
    else:
        # shortcut: Conv3x3(stride) -> BN  (no ReLU); stored bf16 for the fused residual add
        sc = conv3x3_bn(x, params['ws'], params['gs'], params['bs'],
                        stride=strides, pre_relu=False, out_dtype=jnp.bfloat16)
    # main: ReLU -> Conv1 -> BN1 -> ReLU -> Conv2 -> BN2  (+ shortcut fused into conv2 pass 2)
    y1 = conv3x3_bn(x, params['w1'], params['g1'], params['b1'],
                    stride=strides, pre_relu=True, post_relu=True,
                    out_dtype=jnp.bfloat16)
    y2 = conv3x3_bn(y1, params['w2'], params['g2'], params['b2'],
                    stride=(1, 1), pre_relu=False, residual=sc,
                    out_dtype=jnp.float32)
    return jnp.transpose(y2, (0, 3, 1, 2))  # back to NCHW


# ---------------- pure-JAX reference for correctness check ----------------
def _ref_conv_bn(x, w, g, b, stride, pre_relu, post_relu=False):
    xi = jnp.maximum(x, 0.0) if pre_relu else x
    y = lax.conv_general_dilated(
        xi.astype(jnp.bfloat16), w.astype(jnp.bfloat16),
        window_strides=stride, padding=((1, 1), (1, 1)),
        dimension_numbers=('NHWC', 'HWIO', 'NHWC'),
        preferred_element_type=jnp.float32)
    mu = jnp.mean(y, axis=(0, 1, 2), keepdims=True)
    var = jnp.mean((y - mu) ** 2, axis=(0, 1, 2), keepdims=True)
    out = (y - mu) * (g * lax.rsqrt(var + EPS)) + b
    return jnp.maximum(out, 0.0) if post_relu else out


def ref_basic_block(x_nchw, params, strides, identity):
    x = jnp.transpose(x_nchw, (0, 2, 3, 1))
    if identity:
        sc = x
    else:
        sc = _ref_conv_bn(x, params['ws'], params['gs'], params['bs'], strides, False)
        sc = sc.astype(jnp.bfloat16).astype(jnp.float32)  # kernel stores shortcut in bf16
    y1 = _ref_conv_bn(x, params['w1'], params['g1'], params['b1'], strides,
                      True, post_relu=True)
    y1 = y1.astype(jnp.bfloat16)  # kernel's inter-conv intermediate is bf16
    y2 = _ref_conv_bn(y1, params['w2'], params['g2'], params['b2'], (1, 1), False) + sc
    return jnp.transpose(y2, (0, 3, 1, 2))


if __name__ == "__main__":
    key = jax.random.PRNGKey(0)
    kx, kp1, kp2 = jax.random.split(key, 3)
    x = jax.random.normal(kx, (2, 4, 16, 16), jnp.float32)  # NCHW, like PyTorch

    # Case 1: projection shortcut (in=4 -> out=8, stride (2,2))
    p1, id1 = init_basic_block(kp1, 4, 8, (2, 2))
    out1 = jax.block_until_ready(basic_block_forward(x, p1, (2, 2), id1))
    ref1 = ref_basic_block(x, p1, (2, 2), id1)
    assert out1.shape == (2, 8, 8, 8), out1.shape
    # bf16 MXU operands + bf16-stored intermediates are deliberate precision choices
    assert jnp.allclose(out1, ref1, rtol=1e-2, atol=2e-2), \
        float(jnp.max(jnp.abs(out1 - ref1)))

    # Case 2: identity shortcut (in=out=4, stride (1,1))
    p2, id2 = init_basic_block(kp2, 4, 4, (1, 1))
    out2 = jax.block_until_ready(basic_block_forward(x, p2, (1, 1), id2))
    ref2 = ref_basic_block(x, p2, (1, 1), id2)
    assert out2.shape == (2, 4, 16, 16), out2.shape
    assert jnp.allclose(out2, ref2, rtol=1e-2, atol=2e-2), \
        float(jnp.max(jnp.abs(out2 - ref2)))

    print("KERNEL_OK")
</pallas_src>

<mosaic_0001>
module attributes {stable_mosaic.version = 11 : i64} {
  func.func @_conv_stats_kernel(%arg0: i32, %arg1: memref<64x128xbf16, #tpu.memory_space<vmem>>, %arg2: memref<128x128xbf16, #tpu.memory_space<vmem>>, %arg3: memref<64x128xbf16, #tpu.memory_space<vmem>>, %arg4: memref<8x128xf32, #tpu.memory_space<vmem>>) attributes {dimension_semantics = [#tpu.dimension_semantics<parallel>], iteration_bounds = array<i64: 2>, scalar_prefetch = 0 : i64, scratch_operands = 0 : i64, tpu.core_type = #tpu.core_type<tc>, window_params = [{transform_indices = @transform_0, window_bounds = array<i64: 64, 128>}, {pipeline_mode = #tpu.pipeline_mode<synchronous>, transform_indices = @transform_1, window_bounds = array<i64: 128, 128>}, {transform_indices = @transform_2, window_bounds = array<i64: 64, 128>}, {transform_indices = @transform_3, window_bounds = array<i64: 8, 128>}]} {
    %c0 = arith.constant 0 : index
    %c0_0 = arith.constant 0 : index
    %0 = vector.load %arg1[%c0, %c0_0] : memref<64x128xbf16, #tpu.memory_space<vmem>>, vector<64x128xbf16>
    %c0_1 = arith.constant 0 : index
    %c0_2 = arith.constant 0 : index
    %1 = vector.load %arg2[%c0_1, %c0_2] : memref<128x128xbf16, #tpu.memory_space<vmem>>, vector<128x128xbf16>
    %cst = arith.constant dense<0.000000e+00> : vector<64x128xf32>
    %2 = tpu.matmul %0, %1, %cst {dimension_numbers = #tpu.dot_dimension_numbers<[1], [0], [0], [1], [0, 0, 1, 1], [], []>} : vector<64x128xbf16>, vector<128x128xbf16>, vector<64x128xf32> -> vector<64x128xf32>
    %3 = arith.truncf %2 : vector<64x128xf32> to vector<64x128xbf16>
    %c0_3 = arith.constant 0 : index
    %c0_4 = arith.constant 0 : index
    %4 = vector.load %arg3[%c0_3, %c0_4] : memref<64x128xbf16, #tpu.memory_space<vmem>>, vector<64x128xbf16>
    tpu.vector_store %arg3[%c0_3, %c0_4], %3 {strides = array<i32>} : memref<64x128xbf16, #tpu.memory_space<vmem>>, vector<64x128xbf16>,
    %cst_5 = arith.constant dense<0.000000e+00> : vector<128xf32>
    %5 = vector.multi_reduction <add>, %2, %cst_5 [0] : vector<64x128xf32> to vector<128xf32>
    %6 = vector.shape_cast %5 : vector<128xf32> to vector<1x128xf32>
    %7 = arith.mulf %2, %2 : vector<64x128xf32>
    %cst_6 = arith.constant dense<0.000000e+00> : vector<128xf32>
    %8 = vector.multi_reduction <add>, %7, %cst_6 [0] : vector<64x128xf32> to vector<128xf32>
    %9 = vector.shape_cast %8 : vector<128xf32> to vector<1x128xf32>
    %10 = tpu.iota {dimensions = array<i32: 0>} : vector<8x128xi32>
    %c0_i32 = arith.constant 0 : i32
    %11 = vector.broadcast %c0_i32 : i32 to vector<8x128xi32>
    %12 = arith.cmpi eq, %10, %11 : vector<8x128xi32>
    %c1_i32 = arith.constant 1 : i32
    %13 = vector.broadcast %c1_i32 : i32 to vector<8x128xi32>
    %14 = arith.cmpi eq, %10, %13 : vector<8x128xi32>
    %cst_7 = arith.constant 0.000000e+00 : f32
    %15 = vector.shape_cast %9 : vector<1x128xf32> to vector<1x128xf32>
    %16 = vector.broadcast %15 : vector<1x128xf32> to vector<8x128xf32>
    %17 = vector.broadcast %cst_7 : f32 to vector<8x128xf32>
    %18 = arith.select %14, %16, %17 : vector<8x128xi1>, vector<8x128xf32>
    %19 = vector.shape_cast %6 : vector<1x128xf32> to vector<1x128xf32>
    %20 = vector.broadcast %19 : vector<1x128xf32> to vector<8x128xf32>
    %21 = arith.select %12, %20, %18 : vector<8x128xi1>, vector<8x128xf32>
    %c0_8 = arith.constant 0 : index
    %c0_9 = arith.constant 0 : index
    %22 = vector.load %arg4[%c0_8, %c0_9] : memref<8x128xf32, #tpu.memory_space<vmem>>, vector<8x128xf32>
    tpu.vector_store %arg4[%c0_8, %c0_9], %21 {strides = array<i32>} : memref<8x128xf32, #tpu.memory_space<vmem>>, vector<8x128xf32>,
    return
  }
  func.func @transform_0(%arg0: i32) -> (i32, i32) {
    %c0_i32 = arith.constant 0 : i32
    %c0_i32_0 = arith.constant 0 : i32
    return %arg0, %c0_i32 : i32, i32
  }
  func.func @transform_1(%arg0: i32) -> (i32, i32) {
    %c0_i32 = arith.constant 0 : i32
    %c0_i32_0 = arith.constant 0 : i32
    %c0_i32_1 = arith.constant 0 : i32
    return %c0_i32, %c0_i32_0 : i32, i32
  }
  func.func @transform_2(%arg0: i32) -> (i32, i32) {
    %c0_i32 = arith.constant 0 : i32
    %c0_i32_0 = arith.constant 0 : i32
    return %arg0, %c0_i32 : i32, i32
  }
  func.func @transform_3(%arg0: i32) -> (i32, i32) {
    %c0_i32 = arith.constant 0 : i32
    %c0_i32_0 = arith.constant 0 : i32
    return %arg0, %c0_i32 : i32, i32
  }
}

module attributes {stable_mosaic.version = 11 : i64} {
  func.func @_bn_apply_kernel(%arg0: i32, %arg1: memref<64x128xbf16, #tpu.memory_space<vmem>>, %arg2: memref<1x128xf32, #tpu.memory_space<vmem>>, %arg3: memref<1x128xf32, #tpu.memory_space<vmem>>, %arg4: memref<64x128xbf16, #tpu.memory_space<vmem>>) attributes {dimension_semantics = [#tpu.dimension_semantics<parallel>], iteration_bounds = array<i64: 2>, scalar_prefetch = 0 : i64, scratch_operands = 0 : i64, tpu.core_type = #tpu.core_type<tc>, window_params = [{transform_indices = @transform_0, window_bounds = array<i64: 64, 128>}, {pipeline_mode = #tpu.pipeline_mode<synchronous>, transform_indices = @transform_1, window_bounds = array<i64: 1, 128>}, {pipeline_mode = #tpu.pipeline_mode<synchronous>, transform_indices = @transform_2, window_bounds = array<i64: 1, 128>}, {transform_indices = @transform_3, window_bounds = array<i64: 64, 128>}]} {
    %c0 = arith.constant 0 : index
    %c0_0 = arith.constant 0 : index
    %0 = vector.load %arg1[%c0, %c0_0] : memref<64x128xbf16, #tpu.memory_space<vmem>>, vector<64x128xbf16>
    %1 = arith.extf %0 : vector<64x128xbf16> to vector<64x128xf32>
    %c0_1 = arith.constant 0 : index
    %c0_2 = arith.constant 0 : index
    %2 = vector.load %arg2[%c0_1, %c0_2] : memref<1x128xf32, #tpu.memory_space<vmem>>, vector<1x128xf32>
    %3 = vector.broadcast %2 : vector<1x128xf32> to vector<64x128xf32>
    %4 = arith.mulf %1, %3 : vector<64x128xf32>
    %c0_3 = arith.constant 0 : index
    %c0_4 = arith.constant 0 : index
    %5 = vector.load %arg3[%c0_3, %c0_4] : memref<1x128xf32, #tpu.memory_space<vmem>>, vector<1x128xf32>
    %6 = vector.broadcast %5 : vector<1x128xf32> to vector<64x128xf32>
    %7 = arith.addf %4, %6 : vector<64x128xf32>
    %cst = arith.constant 0.000000e+00 : f32
    %8 = vector.broadcast %cst : f32 to vector<64x128xf32>
    %9 = arith.maximumf %7, %8 : vector<64x128xf32>
    %10 = arith.truncf %9 : vector<64x128xf32> to vector<64x128xbf16>
    %c0_5 = arith.constant 0 : index
    %c0_6 = arith.constant 0 : index
    %11 = vector.load %arg4[%c0_5, %c0_6] : memref<64x128xbf16, #tpu.memory_space<vmem>>, vector<64x128xbf16>
    tpu.vector_store %arg4[%c0_5, %c0_6], %10 {strides = array<i32>} : memref<64x128xbf16, #tpu.memory_space<vmem>>, vector<64x128xbf16>,
    return
  }
  func.func @transform_0(%arg0: i32) -> (i32, i32) {
    %c0_i32 = arith.constant 0 : i32
    %c0_i32_0 = arith.constant 0 : i32
    return %arg0, %c0_i32 : i32, i32
  }
  func.func @transform_1(%arg0: i32) -> (i32, i32) {
    %c0_i32 = arith.constant 0 : i32
    %c0_i32_0 = arith.constant 0 : i32
    %c0_i32_1 = arith.constant 0 : i32
    return %c0_i32, %c0_i32_0 : i32, i32
  }
  func.func @transform_2(%arg0: i32) -> (i32, i32) {
    %c0_i32 = arith.constant 0 : i32
    %c0_i32_0 = arith.constant 0 : i32
    %c0_i32_1 = arith.constant 0 : i32
    return %c0_i32, %c0_i32_0 : i32, i32
  }
  func.func @transform_3(%arg0: i32) -> (i32, i32) {
    %c0_i32 = arith.constant 0 : i32
    %c0_i32_0 = arith.constant 0 : i32
    return %arg0, %c0_i32 : i32, i32
  }
}

module attributes {stable_mosaic.version = 11 : i64} {
  func.func @_bn_apply_kernel(%arg0: i32, %arg1: memref<64x128xbf16, #tpu.memory_space<vmem>>, %arg2: memref<1x128xf32, #tpu.memory_space<vmem>>, %arg3: memref<1x128xf32, #tpu.memory_space<vmem>>, %arg4: memref<64x128xbf16, #tpu.memory_space<vmem>>) attributes {dimension_semantics = [#tpu.dimension_semantics<parallel>], iteration_bounds = array<i64: 2>, scalar_prefetch = 0 : i64, scratch_operands = 0 : i64, tpu.core_type = #tpu.core_type<tc>, window_params = [{transform_indices = @transform_0, window_bounds = array<i64: 64, 128>}, {pipeline_mode = #tpu.pipeline_mode<synchronous>, transform_indices = @transform_1, window_bounds = array<i64: 1, 128>}, {pipeline_mode = #tpu.pipeline_mode<synchronous>, transform_indices = @transform_2, window_bounds = array<i64: 1, 128>}, {transform_indices = @transform_3, window_bounds = array<i64: 64, 128>}]} {
    %c0 = arith.constant 0 : index
    %c0_0 = arith.constant 0 : index
    %0 = vector.load %arg1[%c0, %c0_0] : memref<64x128xbf16, #tpu.memory_space<vmem>>, vector<64x128xbf16>
    %1 = arith.extf %0 : vector<64x128xbf16> to vector<64x128xf32>
    %c0_1 = arith.constant 0 : index
    %c0_2 = arith.constant 0 : index
    %2 = vector.load %arg2[%c0_1, %c0_2] : memref<1x128xf32, #tpu.memory_space<vmem>>, vector<1x128xf32>
    %3 = vector.broadcast %2 : vector<1x128xf32> to vector<64x128xf32>
    %4 = arith.mulf %1, %3 : vector<64x128xf32>
    %c0_3 = arith.constant 0 : index
    %c0_4 = arith.constant 0 : index
    %5 = vector.load %arg3[%c0_3, %c0_4] : memref<1x128xf32, #tpu.memory_space<vmem>>, vector<1x128xf32>
    %6 = vector.broadcast %5 : vector<1x128xf32> to vector<64x128xf32>
    %7 = arith.addf %4, %6 : vector<64x128xf32>
    %8 = arith.truncf %7 : vector<64x128xf32> to vector<64x128xbf16>
    %c0_5 = arith.constant 0 : index
    %c0_6 = arith.constant 0 : index
    %9 = vector.load %arg4[%c0_5, %c0_6] : memref<64x128xbf16, #tpu.memory_space<vmem>>, vector<64x128xbf16>
    tpu.vector_store %arg4[%c0_5, %c0_6], %8 {strides = array<i32>} : memref<64x128xbf16, #tpu.memory_space<vmem>>, vector<64x128xbf16>,
    return
  }
  func.func @transform_0(%arg0: i32) -> (i32, i32) {
    %c0_i32 = arith.constant 0 : i32
    %c0_i32_0 = arith.constant 0 : i32
    return %arg0, %c0_i32 : i32, i32
  }
  func.func @transform_1(%arg0: i32) -> (i32, i32) {
    %c0_i32 = arith.constant 0 : i32
    %c0_i32_0 = arith.constant 0 : i32
    %c0_i32_1 = arith.constant 0 : i32
    return %c0_i32, %c0_i32_0 : i32, i32
  }
  func.func @transform_2(%arg0: i32) -> (i32, i32) {
    %c0_i32 = arith.constant 0 : i32
    %c0_i32_0 = arith.constant 0 : i32
    %c0_i32_1 = arith.constant 0 : i32
    return %c0_i32, %c0_i32_0 : i32, i32
  }
  func.func @transform_3(%arg0: i32) -> (i32, i32) {
    %c0_i32 = arith.constant 0 : i32
    %c0_i32_0 = arith.constant 0 : i32
    return %arg0, %c0_i32 : i32, i32
  }
}

module attributes {stable_mosaic.version = 11 : i64} {
  func.func @_bn_apply_kernel(%arg0: i32, %arg1: memref<64x128xbf16, #tpu.memory_space<vmem>>, %arg2: memref<1x128xf32, #tpu.memory_space<vmem>>, %arg3: memref<1x128xf32, #tpu.memory_space<vmem>>, %arg4: memref<64x128xbf16, #tpu.memory_space<vmem>>, %arg5: memref<64x128xf32, #tpu.memory_space<vmem>>) attributes {dimension_semantics = [#tpu.dimension_semantics<parallel>], iteration_bounds = array<i64: 2>, scalar_prefetch = 0 : i64, scratch_operands = 0 : i64, tpu.core_type = #tpu.core_type<tc>, window_params = [{transform_indices = @transform_0, window_bounds = array<i64: 64, 128>}, {pipeline_mode = #tpu.pipeline_mode<synchronous>, transform_indices = @transform_1, window_bounds = array<i64: 1, 128>}, {pipeline_mode = #tpu.pipeline_mode<synchronous>, transform_indices = @transform_2, window_bounds = array<i64: 1, 128>}, {transform_indices = @transform_3, window_bounds = array<i64: 64, 128>}, {transform_indices = @transform_4, window_bounds = array<i64: 64, 128>}]} {
    %c0 = arith.constant 0 : index
    %c0_0 = arith.constant 0 : index
    %0 = vector.load %arg1[%c0, %c0_0] : memref<64x128xbf16, #tpu.memory_space<vmem>>, vector<64x128xbf16>
    %1 = arith.extf %0 : vector<64x128xbf16> to vector<64x128xf32>
    %c0_1 = arith.constant 0 : index
    %c0_2 = arith.constant 0 : index
    %2 = vector.load %arg2[%c0_1, %c0_2] : memref<1x128xf32, #tpu.memory_space<vmem>>, vector<1x128xf32>
    %3 = vector.broadcast %2 : vector<1x128xf32> to vector<64x128xf32>
    %4 = arith.mulf %1, %3 : vector<64x128xf32>
    %c0_3 = arith.constant 0 : index
    %c0_4 = arith.constant 0 : index
    %5 = vector.load %arg3[%c0_3, %c0_4] : memref<1x128xf32, #tpu.memory_space<vmem>>, vector<1x128xf32>
    %6 = vector.broadcast %5 : vector<1x128xf32> to vector<64x128xf32>
    %7 = arith.addf %4, %6 : vector<64x128xf32>
    %c0_5 = arith.constant 0 : index
    %c0_6 = arith.constant 0 : index
    %8 = vector.load %arg4[%c0_5, %c0_6] : memref<64x128xbf16, #tpu.memory_space<vmem>>, vector<64x128xbf16>
    %9 = arith.extf %8 : vector<64x128xbf16> to vector<64x128xf32>
    %10 = arith.addf %7, %9 : vector<64x128xf32>
    %c0_7 = arith.constant 0 : index
    %c0_8 = arith.constant 0 : index
    %11 = vector.load %arg5[%c0_7, %c0_8] : memref<64x128xf32, #tpu.memory_space<vmem>>, vector<64x128xf32>
    tpu.vector_store %arg5[%c0_7, %c0_8], %10 {strides = array<i32>} : memref<64x128xf32, #tpu.memory_space<vmem>>, vector<64x128xf32>,
    return
  }
  func.func @transform_0(%arg0: i32) -> (i32, i32) {
    %c0_i32 = arith.constant 0 : i32
    %c0_i32_0 = arith.constant 0 : i32
    return %arg0, %c0_i32 : i32, i32
  }
  func.func @transform_1(%arg0: i32) -> (i32, i32) {
    %c0_i32 = arith.constant 0 : i32
    %c0_i32_0 = arith.constant 0 : i32
    %c0_i32_1 = arith.constant 0 : i32
    return %c0_i32, %c0_i32_0 : i32, i32
  }
  func.func @transform_2(%arg0: i32) -> (i32, i32) {
    %c0_i32 = arith.constant 0 : i32
    %c0_i32_0 = arith.constant 0 : i32
    %c0_i32_1 = arith.constant 0 : i32
    return %c0_i32, %c0_i32_0 : i32, i32
  }
  func.func @transform_3(%arg0: i32) -> (i32, i32) {
    %c0_i32 = arith.constant 0 : i32
    %c0_i32_0 = arith.constant 0 : i32
    return %arg0, %c0_i32 : i32, i32
  }
  func.func @transform_4(%arg0: i32) -> (i32, i32) {
    %c0_i32 = arith.constant 0 : i32
    %c0_i32_0 = arith.constant 0 : i32
    return %arg0, %c0_i32 : i32, i32
  }
}

</mosaic_0001>

<llo_original>
// kernel: basic_block_forward.9
$region0: #{basic_block_forward.9}
  #allocation0 [shape = 'u32[]', space=smem, size = 0x4, offset = 0x4, fixed_abs, tag = 'smem constant byte address 0x4 - core index']
  #allocation1 [shape = 'u32[72,128]{1,0:T(1,128)}', space=vmem, size = 0x9000, scoped, tag = 'internal scratch']
  %s0 = inlined_call_operand.vmem [shape: bf16[128,128], index: 0, kind: input, shape index: {}]
  %s1 = inlined_call_operand.vmem [shape: f32[1,128], index: 1, kind: input, shape index: {}]
  %s2 = inlined_call_operand.vmem [shape: f32[1,128], index: 2, kind: input, shape index: {}]
  %s3 = inlined_call_operand.vmem [shape: bf16[128,128], index: 3, kind: output, shape index: {}]
  %s4 = sld [smem:[#allocation0]]
  $region45: #{basic_block_forward.9} parent=0
    _
  %s6 = ssub.s32 1, %s4
  %s7 = scalar_select 0, %s6, %s4
  loop: start=0, step=1, limit=4
  $region2: #{basic_block_forward.9} parent=0 // loop_pre_header
    _
  $region3: #{basic_block_forward.9} parent=0 // loop_header
    %s9 = sphi 0, %s13
    %p10 = scmp.ge.s32.totalorder %s9, 4
    %s19 = sphi 0, %s21
    %s22 = sphi 0, %s19
    %s23 = sphi 0, %s22
    %s39 = sphi 0, %s23
    %s43 = sphi 0, %s43
    %s45 = sphi 0, %s43
    %s46 = sphi 0, %s45
    %s60 = sphi 0, %s46
    %s64 = sphi 0, %s64
    %s66 = sphi 0, %s64
    %s67 = sphi 0, %s66
    %s81 = sphi 0, %s67
    %s87 = sphi 0, %s89
    %s90 = sphi 0, %s87
    %s91 = sphi 0, %s90
    %s107 = sphi 0, %s91
  $region4: #{basic_block_forward.9} parent=0 // loop_header_branch
    %12 = sbr.rel (%p10) target = $region8
  $region5: #{basic_block_forward.9} parent=0 // loop_body
    %s14 = ssub.s32 %s9, 1
    %s15 = ssub.s32 %s9, 2
    %s16 = sadd.s32 %s9, 1
    %s17 = ssub.s32 %s9, %s16
    %p18 = scmp.eq.s32.totalorder %s17, 0
    %s20 = sadd.s32 %s19, 1
    %s21 = scalar_select %p18, %s19, %s20
    %p24 = pneg %p18
    %p25 = scmp.eq.s32.totalorder %s9, 1
    %p26 = por %p24, %p25
    %p27 = scmp.ne.s32.totalorder %s19, %s22
    %p28 = scmp.eq.s32.totalorder %s9, 0
    %p29 = por %p27, %p28
    %p30 = scmp.ne.s32.totalorder %s19, %s22
    %p31 = scmp.eq.s32.totalorder %s14, 1
    %p32 = por %p30, %p31
    %p33 = scmp.ne.s32.totalorder %s22, %s23
    %p34 = scmp.eq.s32.totalorder %s14, 0
    %p35 = por %p33, %p34
    %p36 = scmp.ne.s32.totalorder %s22, %s23
    %p37 = scmp.eq.s32.totalorder %s15, 1
    %p38 = por %p36, %p37
    %p40 = scmp.ne.s32.totalorder %s23, %s39
    %p41 = scmp.eq.s32.totalorder %s15, 0
    %p42 = por %p40, %p41
    %s44 = sadd.s32 %s43, 1
    %p47 = scmp.eq.s32.totalorder %s9, 1
    %p48 = scmp.ne.s32.totalorder %s43, %s45
    %p49 = scmp.eq.s32.totalorder %s9, 0
    %p50 = por %p48, %p49
    %p51 = scmp.ne.s32.totalorder %s43, %s45
    %p52 = scmp.eq.s32.totalorder %s14, 1
    %p53 = por %p51, %p52
    %p54 = scmp.ne.s32.totalorder %s45, %s46
    %p55 = scmp.eq.s32.totalorder %s14, 0
    %p56 = por %p54, %p55
    %p57 = scmp.ne.s32.totalorder %s45, %s46
    %p58 = scmp.eq.s32.totalorder %s15, 1
    %p59 = por %p57, %p58
    %p61 = scmp.ne.s32.totalorder %s46, %s60
    %p62 = scmp.eq.s32.totalorder %s15, 0
    %p63 = por %p61, %p62
    %s65 = sadd.s32 %s64, 1
    %p68 = scmp.eq.s32.totalorder %s9, 1
    %p69 = scmp.ne.s32.totalorder %s64, %s66
    %p70 = scmp.eq.s32.totalorder %s9, 0
    %p71 = por %p69, %p70
    %p72 = scmp.ne.s32.totalorder %s64, %s66
    %p73 = scmp.eq.s32.totalorder %s14, 1
    %p74 = por %p72, %p73
    %p75 = scmp.ne.s32.totalorder %s66, %s67
    %p76 = scmp.eq.s32.totalorder %s14, 0
    %p77 = por %p75, %p76
    %p78 = scmp.ne.s32.totalorder %s66, %s67
    %p79 = scmp.eq.s32.totalorder %s15, 1
    %p80 = por %p78, %p79
    %p82 = scmp.ne.s32.totalorder %s67, %s81
    %p83 = scmp.eq.s32.totalorder %s15, 0
    %p84 = por %p82, %p83
    %s85 = ssub.s32 %s9, %s16
    %p86 = scmp.eq.s32.totalorder %s85, 0
    %s88 = sadd.s32 %s87, 1
    %s89 = scalar_select %p86, %s87, %s88
    %p92 = pneg %p86
    %p93 = scmp.eq.s32.totalorder %s9, 1
    %p94 = por %p92, %p93
    %p95 = scmp.ne.s32.totalorder %s87, %s90
    %p96 = scmp.eq.s32.totalorder %s9, 0
    %p97 = por %p95, %p96
    %p98 = scmp.ne.s32.totalorder %s87, %s90
    %p99 = scmp.eq.s32.totalorder %s14, 1
    %p100 = por %p98, %p99
    %p101 = scmp.ne.s32.totalorder %s90, %s91
    %p102 = scmp.eq.s32.totalorder %s14, 0
    %p103 = por %p101, %p102
    %p104 = scmp.ne.s32.totalorder %s90, %s91
    %p105 = scmp.eq.s32.totalorder %s15, 1
    %p106 = por %p104, %p105
    %p108 = scmp.ne.s32.totalorder %s91, %s107
    %p109 = scmp.eq.s32.totalorder %s15, 0
    %p110 = por %p108, %p109
    %p111 = scmp.le.s32.totalorder 1, %s9
    %p112 = scmp.lt.s32.totalorder %s9, 3
    %p113 = pnand %p111, %p112
    %p114 = pneg %p113
    // Predicated region
    $region9: #{basic_block_forward.9} parent=5 // pred_check
      _
    $region10: #{basic_block_forward.9} parent=5 // pred_check_branch
      %116 = sbr.rel (%p113) target = $region12
    $region11: #{basic_block_forward.9} parent=5 // pred_region
      %s117 = ssub.s32 %s9, 1
      // Predicated region
      $region13: #{basic_block_forward.9} parent=11 // pred_check
        %p118 = pneg %p56
      $region14: #{basic_block_forward.9} parent=11 // pred_check_branch
        %120 = sbr.rel (%p118) target = $region16
      $region15: #{basic_block_forward.9} parent=11 // pred_region
        _
      $region16: #{basic_block_forward.9} parent=11 // pred_fallthru
        _
      // Predicated region
      $region17: #{basic_block_forward.9} parent=11 // pred_check
        %p121 = pneg %p77
      $region18: #{basic_block_forward.9} parent=11 // pred_check_branch
        %123 = sbr.rel (%p121) target = $region20
      $region19: #{basic_block_forward.9} parent=11 // pred_region
        _
      $region20: #{basic_block_forward.9} parent=11 // pred_fallthru
        _
    $region12: #{basic_block_forward.9} parent=5 // pred_fallthru
      _
    %p124 = scmp.lt.s32.totalorder %s9, 2
    // Predicated region
    $region21: #{basic_block_forward.9} parent=5 // pred_check
      %p125 = pneg %p124
    $region22: #{basic_block_forward.9} parent=5 // pred_check_branch
      %127 = sbr.rel (%p125) target = $region24
    $region23: #{basic_block_forward.9} parent=5 // pred_region
      // Predicated region
      $region25: #{basic_block_forward.9} parent=23 // pred_check
        %p128 = pneg %p29
      $region26: #{basic_block_forward.9} parent=23 // pred_check_branch
        %130 = sbr.rel (%p128) target = $region28
      $region27: #{basic_block_forward.9} parent=23 // pred_region
        %s131 = smul.u32 8, %s9
        %p132 = scmp.lt.s32.totalorder %s131, 15
        %s133 = scalar_select %p132, %s131, 15
        %s134 = smul.addr %s133, 4
        %s135 = scalar_lea.vmem %s0, %s134
        %s136 = smul.u32 8, %s9
      $region28: #{basic_block_forward.9} parent=23 // pred_fallthru
        _
    $region24: #{basic_block_forward.9} parent=5 // pred_fallthru
      _
    %p137 = scmp.le.s32.totalorder 1, %s9
    %p138 = scmp.lt.s32.totalorder %s9, 3
    %p139 = pnand %p137, %p138
    %p140 = pneg %p139
    // Predicated region
    $region29: #{basic_block_forward.9} parent=5 // pred_check
      _
    $region30: #{basic_block_forward.9} parent=5 // pred_check_branch
      %142 = sbr.rel (%p139) target = $region32
    $region31: #{basic_block_forward.9} parent=5 // pred_region
      %s143 = ssub.s32 %s9, 1
      %s144 = smul.u32 8, %s14
      %p145 = scmp.lt.s32.totalorder %s144, 15
      %s146 = scalar_select %p145, %s144, 15
      %s147 = smul.addr %s146, 4
      %s148 = scalar_lea.vmem %s0, %s147
      %p149 = pneg %p35
      %p150 = pneg %p32
      %p151 = pneg %p56
      %p152 = pneg %p53
      %p153 = pneg %p77
      %p154 = pneg %p74
      %p155 = pneg %p103
      %p156 = pneg %p100
      %s157 = smul.u32 8, %s14
      %p158 = scmp.lt.s32.totalorder %s157, 15
      %s159 = scalar_select %p158, %s157, 15
      %s160 = smul.addr %s159, 4
      %s161 = scalar_lea.vmem %s3, %s160
      %s162 = smul.u32 8, %s14
      %p163 = scmp.lt.s32.totalorder %s162, 15
      %s164 = scalar_select %p163, %s162, 15
      %s165 = smul.addr %s164, 4
      %s166 = scalar_lea.vmem %s0, %s165
      %s167 = smul.u32 8, %s14
      %s168 = smul.u32 8, %s14
      %p169 = scmp.lt.s32.totalorder %s168, 15
      %s170 = scalar_select %p169, %s168, 15
      %s171 = smul.addr %s170, 4
      %s172 = scalar_lea.vmem %s3, %s171
      %s173 = smul.u32 8, %s14
      %v174 = vld [vmem:[%s166] sm:$0xf]
      %v175 = vld [vmem:[%s166 + $0x4] sm:$0xf]
      %v176 = vld [vmem:[%s166 + $0x8] sm:$0xf]
      %v177 = vld [vmem:[%s166 + $0xc] sm:$0xf]
      %v178 = vld [vmem:[%s166 + $0x10] sm:$0xf]
      %v179 = vld [vmem:[%s166 + $0x14] sm:$0xf]
      %v180 = vld [vmem:[%s166 + $0x18] sm:$0xf]
      %v181 = vld [vmem:[%s166 + $0x1c] sm:$0xf]
      %v182 = vunpack.c.l.bf16 %v174
      %v183 = vunpack.c.l.bf16 %v175
      %v184 = vunpack.c.l.bf16 %v176
      %v185 = vunpack.c.l.bf16 %v177
      %v186 = vunpack.c.l.bf16 %v178
      %v187 = vunpack.c.l.bf16 %v179
      %v188 = vunpack.c.l.bf16 %v180
      %v189 = vunpack.c.l.bf16 %v181
      %v190 = vld [vmem:[%s1] sm:$0x1]
      %v192 = vperm.slane %v190, 0
      %v194 = vmul.f32 %v182, %v192
      %v195 = vmul.f32 %v183, %v192
      %v196 = vmul.f32 %v184, %v192
      %v197 = vmul.f32 %v185, %v192
      %v198 = vmul.f32 %v186, %v192
      %v199 = vmul.f32 %v187, %v192
      %v200 = vmul.f32 %v188, %v192
      %v201 = vmul.f32 %v189, %v192
      %v202 = vld [vmem:[%s2] sm:$0x1]
      %v204 = vperm.slane %v202, 0
      %v206 = vadd.f32 %v194, %v204
      %v207 = vadd.f32 %v195, %v204
      %v208 = vadd.f32 %v196, %v204
      %v209 = vadd.f32 %v197, %v204
      %v210 = vadd.f32 %v198, %v204
      %v211 = vadd.f32 %v199, %v204
      %v212 = vadd.f32 %v200, %v204
      %v213 = vadd.f32 %v201, %v204
      %v214 = vmax.f32 %v206, 0.0
      %v215 = vmax.f32 %v207, 0.0
      %v216 = vmax.f32 %v208, 0.0
      %v217 = vmax.f32 %v209, 0.0
      %v218 = vmax.f32 %v210, 0.0
      %v219 = vmax.f32 %v211, 0.0
      %v220 = vmax.f32 %v212, 0.0
      %v221 = vmax.f32 %v213, 0.0
      %v222 = vpack.c.bf16 %v214, %v214
      %v223 = vpack.c.bf16 %v215, %v215
      %v224 = vpack.c.bf16 %v216, %v216
      %v225 = vpack.c.bf16 %v217, %v217
      %v226 = vpack.c.bf16 %v218, %v218
      %v227 = vpack.c.bf16 %v219, %v219
      %v228 = vpack.c.bf16 %v220, %v220
      %v229 = vpack.c.bf16 %v221, %v221
      %230 = vst [vmem:[%s172] sm:$0xf] %v222
      %231 = vst [vmem:[%s172 + $0x4] sm:$0xf] %v223
      %232 = vst [vmem:[%s172 + $0x8] sm:$0xf] %v224
      %233 = vst [vmem:[%s172 + $0xc] sm:$0xf] %v225
      %234 = vst [vmem:[%s172 + $0x10] sm:$0xf] %v226
      %235 = vst [vmem:[%s172 + $0x14] sm:$0xf] %v227
      %236 = vst [vmem:[%s172 + $0x18] sm:$0xf] %v228
      %237 = vst [vmem:[%s172 + $0x1c] sm:$0xf] %v229
      %s238 = smul.u32 8, %s14
      %p239 = scmp.lt.s32.totalorder %s238, 15
      %s240 = scalar_select %p239, %s238, 15
      %s241 = smul.addr %s240, 4
      %s242 = scalar_lea.vmem %s3, %s241
      // Predicated region
      $region33: #{basic_block_forward.9} parent=31 // pred_check
        %p243 = pneg %p100
      $region34: #{basic_block_forward.9} parent=31 // pred_check_branch
        %245 = sbr.rel (%p243) target = $region36
      $region35: #{basic_block_forward.9} parent=31 // pred_region
        %s246 = smul.u32 8, %s14
      $region36: #{basic_block_forward.9} parent=31 // pred_fallthru
        _
    $region32: #{basic_block_forward.9} parent=5 // pred_fallthru
      _
    %p247 = scmp.le.s32.totalorder 2, %s9
    // Predicated region
    $region37: #{basic_block_forward.9} parent=5 // pred_check
      %p248 = pneg %p247
    $region38: #{basic_block_forward.9} parent=5 // pred_check_branch
      %250 = sbr.rel (%p248) target = $region40
    $region39: #{basic_block_forward.9} parent=5 // pred_region
      %s251 = ssub.s32 %s9, 2
      // Predicated region
      $region41: #{basic_block_forward.9} parent=39 // pred_check
        %p252 = pneg %p106
      $region42: #{basic_block_forward.9} parent=39 // pred_check_branch
        %254 = sbr.rel (%p252) target = $region44
      $region43: #{basic_block_forward.9} parent=39 // pred_region
        %s255 = smul.u32 8, %s15
        %p256 = scmp.lt.s32.totalorder %s255, 15
        %s257 = scalar_select %p256, %s255, 15
        %s258 = smul.addr %s257, 4
        %s259 = scalar_lea.vmem %s3, %s258
      $region44: #{basic_block_forward.9} parent=39 // pred_fallthru
        _
    $region40: #{basic_block_forward.9} parent=5 // pred_fallthru
      _
  $region6: #{basic_block_forward.9} parent=0 // loop_footer
    %s13 = sadd.s32 1, %s9
  $region7: #{basic_block_forward.9} parent=0 // loop_footer_branch
    %8 = sbr.rel target = $region3
  $region8: #{basic_block_forward.9} parent=0 // loop_exit
    _

// kernel: basic_block_forward.8
$region0: #{basic_block_forward.8}
  #allocation0 [shape = 'u32[]', space=smem, size = 0x4, offset = 0x4, fixed_abs, tag = 'smem constant byte address 0x4 - core index']
  #allocation1 [shape = 'u32[72,128]{1,0:T(1,128)}', space=vmem, size = 0x9000, scoped, tag = 'internal scratch']
  %s0 = inlined_call_operand.vmem [shape: bf16[128,128], index: 0, kind: input, shape index: {}]
  %s1 = inlined_call_operand.vmem [shape: bf16[128,128], index: 1, kind: input, shape index: {}]
  %s2 = inlined_call_operand.vmem [shape: bf16[128,128], index: 2, kind: output, shape index: {0}]
  %s3 = inlined_call_operand.vmem [shape: f32[16,128], index: 3, kind: output, shape index: {1}]
  %4 = xla_tuple %s2, %s3
  %s5 = sld [smem:[#allocation0]]
  $region49: #{basic_block_forward.8} parent=0
    _
  %s7 = ssub.s32 1, %s5
  %s8 = scalar_select 0, %s7, %s5
  loop: start=0, step=1, limit=4
  $region2: #{basic_block_forward.8} parent=0 // loop_pre_header
    _
  $region3: #{basic_block_forward.8} parent=0 // loop_header
    %s10 = sphi 0, %s14
    %p11 = scmp.ge.s32.totalorder %s10, 4
    %s20 = sphi 0, %s22
    %s23 = sphi 0, %s20
    %s24 = sphi 0, %s23
    %s40 = sphi 0, %s24
    %s44 = sphi 0, %s44
    %s46 = sphi 0, %s44
    %s47 = sphi 0, %s46
    %s61 = sphi 0, %s47
    %s67 = sphi 0, %s69
    %s70 = sphi 0, %s67
    %s71 = sphi 0, %s70
    %s87 = sphi 0, %s71
    %s93 = sphi 0, %s95
    %s96 = sphi 0, %s93
    %s97 = sphi 0, %s96
    %s113 = sphi 0, %s97
  $region4: #{basic_block_forward.8} parent=0 // loop_header_branch
    %13 = sbr.rel (%p11) target = $region8
  $region5: #{basic_block_forward.8} parent=0 // loop_body
    %s15 = ssub.s32 %s10, 1
    %s16 = ssub.s32 %s10, 2
    %s17 = sadd.s32 %s10, 1
    %s18 = ssub.s32 %s10, %s17
    %p19 = scmp.eq.s32.totalorder %s18, 0
    %s21 = sadd.s32 %s20, 1
    %s22 = scalar_select %p19, %s20, %s21
    %p25 = pneg %p19
    %p26 = scmp.eq.s32.totalorder %s10, 1
    %p27 = por %p25, %p26
    %p28 = scmp.ne.s32.totalorder %s20, %s23
    %p29 = scmp.eq.s32.totalorder %s10, 0
    %p30 = por %p28, %p29
    %p31 = scmp.ne.s32.totalorder %s20, %s23
    %p32 = scmp.eq.s32.totalorder %s15, 1
    %p33 = por %p31, %p32
    %p34 = scmp.ne.s32.totalorder %s23, %s24
    %p35 = scmp.eq.s32.totalorder %s15, 0
    %p36 = por %p34, %p35
    %p37 = scmp.ne.s32.totalorder %s23, %s24
    %p38 = scmp.eq.s32.totalorder %s16, 1
    %p39 = por %p37, %p38
    %p41 = scmp.ne.s32.totalorder %s24, %s40
    %p42 = scmp.eq.s32.totalorder %s16, 0
    %p43 = por %p41, %p42
    %s45 = sadd.s32 %s44, 1
    %p48 = scmp.eq.s32.totalorder %s10, 1
    %p49 = scmp.ne.s32.totalorder %s44, %s46
    %p50 = scmp.eq.s32.totalorder %s10, 0
    %p51 = por %p49, %p50
    %p52 = scmp.ne.s32.totalorder %s44, %s46
    %p53 = scmp.eq.s32.totalorder %s15, 1
    %p54 = por %p52, %p53
    %p55 = scmp.ne.s32.totalorder %s46, %s47
    %p56 = scmp.eq.s32.totalorder %s15, 0
    %p57 = por %p55, %p56
    %p58 = scmp.ne.s32.totalorder %s46, %s47
    %p59 = scmp.eq.s32.totalorder %s16, 1
    %p60 = por %p58, %p59
    %p62 = scmp.ne.s32.totalorder %s47, %s61
    %p63 = scmp.eq.s32.totalorder %s16, 0
    %p64 = por %p62, %p63
    %s65 = ssub.s32 %s10, %s17
    %p66 = scmp.eq.s32.totalorder %s65, 0
    %s68 = sadd.s32 %s67, 1
    %s69 = scalar_select %p66, %s67, %s68
    %p72 = pneg %p66
    %p73 = scmp.eq.s32.totalorder %s10, 1
    %p74 = por %p72, %p73
    %p75 = scmp.ne.s32.totalorder %s67, %s70
    %p76 = scmp.eq.s32.totalorder %s10, 0
    %p77 = por %p75, %p76
    %p78 = scmp.ne.s32.totalorder %s67, %s70
    %p79 = scmp.eq.s32.totalorder %s15, 1
    %p80 = por %p78, %p79
    %p81 = scmp.ne.s32.totalorder %s70, %s71
    %p82 = scmp.eq.s32.totalorder %s15, 0
    %p83 = por %p81, %p82
    %p84 = scmp.ne.s32.totalorder %s70, %s71
    %p85 = scmp.eq.s32.totalorder %s16, 1
    %p86 = por %p84, %p85
    %p88 = scmp.ne.s32.totalorder %s71, %s87
    %p89 = scmp.eq.s32.totalorder %s16, 0
    %p90 = por %p88, %p89
    %s91 = ssub.s32 %s10, %s17
    %p92 = scmp.eq.s32.totalorder %s91, 0
    %s94 = sadd.s32 %s93, 1
    %s95 = scalar_select %p92, %s93, %s94
    %p98 = pneg %p92
    %p99 = scmp.eq.s32.totalorder %s10, 1
    %p100 = por %p98, %p99
    %p101 = scmp.ne.s32.totalorder %s93, %s96
    %p102 = scmp.eq.s32.totalorder %s10, 0
    %p103 = por %p101, %p102
    %p104 = scmp.ne.s32.totalorder %s93, %s96
    %p105 = scmp.eq.s32.totalorder %s15, 1
    %p106 = por %p104, %p105
    %p107 = scmp.ne.s32.totalorder %s96, %s97
    %p108 = scmp.eq.s32.totalorder %s15, 0
    %p109 = por %p107, %p108
    %p110 = scmp.ne.s32.totalorder %s96, %s97
    %p111 = scmp.eq.s32.totalorder %s16, 1
    %p112 = por %p110, %p111
    %p114 = scmp.ne.s32.totalorder %s97, %s113
    %p115 = scmp.eq.s32.totalorder %s16, 0
    %p116 = por %p114, %p115
    %p117 = scmp.le.s32.totalorder 1, %s10
    %p118 = scmp.lt.s32.totalorder %s10, 3
    %p119 = pnand %p117, %p118
    %p120 = pneg %p119
    // Predicated region
    $region9: #{basic_block_forward.8} parent=5 // pred_check
      _
    $region10: #{basic_block_forward.8} parent=5 // pred_check_branch
      %122 = sbr.rel (%p119) target = $region12
    $region11: #{basic_block_forward.8} parent=5 // pred_region
      %s123 = ssub.s32 %s10, 1
      // Predicated region
      $region13: #{basic_block_forward.8} parent=11 // pred_check
        %p124 = pneg %p57
      $region14: #{basic_block_forward.8} parent=11 // pred_check_branch
        %126 = sbr.rel (%p124) target = $region16
      $region15: #{basic_block_forward.8} parent=11 // pred_region
        _
      $region16: #{basic_block_forward.8} parent=11 // pred_fallthru
        _
    $region12: #{basic_block_forward.8} parent=5 // pred_fallthru
      _
    %p127 = scmp.lt.s32.totalorder %s10, 2
    // Predicated region
    $region17: #{basic_block_forward.8} parent=5 // pred_check
      %p128 = pneg %p127
    $region18: #{basic_block_forward.8} parent=5 // pred_check_branch
      %130 = sbr.rel (%p128) target = $region20
    $region19: #{basic_block_forward.8} parent=5 // pred_region
      // Predicated region
      $region21: #{basic_block_forward.8} parent=19 // pred_check
        %p131 = pneg %p30
      $region22: #{basic_block_forward.8} parent=19 // pred_check_branch
        %133 = sbr.rel (%p131) target = $region24
      $region23: #{basic_block_forward.8} parent=19 // pred_region
        %s134 = smul.u32 8, %s10
        %p135 = scmp.lt.s32.totalorder %s134, 15
        %s136 = scalar_select %p135, %s134, 15
        %s137 = smul.addr %s136, 4
        %s138 = scalar_lea.vmem %s0, %s137
        %s139 = smul.u32 8, %s10
      $region24: #{basic_block_forward.8} parent=19 // pred_fallthru
        _
    $region20: #{basic_block_forward.8} parent=5 // pred_fallthru
      _
    %p140 = scmp.le.s32.totalorder 1, %s10
    %p141 = scmp.lt.s32.totalorder %s10, 3
    %p142 = pnand %p140, %p141
    %p143 = pneg %p142
    // Predicated region
    $region25: #{basic_block_forward.8} parent=5 // pred_check
      _
    $region26: #{basic_block_forward.8} parent=5 // pred_check_branch
      %145 = sbr.rel (%p142) target = $region28
    $region27: #{basic_block_forward.8} parent=5 // pred_region
      %s146 = ssub.s32 %s10, 1
      %s147 = smul.u32 8, %s15
      %p148 = scmp.lt.s32.totalorder %s147, 15
      %s149 = scalar_select %p148, %s147, 15
      %s150 = smul.addr %s149, 4
      %s151 = scalar_lea.vmem %s0, %s150
      %p152 = pneg %p36
      %p153 = pneg %p33
      %p154 = pneg %p57
      %p155 = pneg %p54
      %p156 = pneg %p83
      %p157 = pneg %p80
      %s158 = smul.u32 8, %s15
      %p159 = scmp.lt.s32.totalorder %s158, 15
      %s160 = scalar_select %p159, %s158, 15
      %s161 = smul.addr %s160, 4
      %s162 = scalar_lea.vmem %s2, %s161
      %p163 = pneg %p109
      %p164 = pneg %p106
      %p165 = scmp.lt.s32.totalorder %s15, 1
      %s166 = scalar_select %p165, %s15, 1
      %s167 = smul.addr %s166, 8
      %s168 = scalar_lea.vmem %s3, %s167
      %s169 = smul.u32 8, %s15
      %p170 = scmp.lt.s32.totalorder %s169, 15
      %s171 = scalar_select %p170, %s169, 15
      %s172 = smul.addr %s171, 4
      %s173 = scalar_lea.vmem %s0, %s172
      %s174 = smul.u32 8, %s15
      %s175 = smul.u32 8, %s15
      %p176 = scmp.lt.s32.totalorder %s175, 15
      %s177 = scalar_select %p176, %s175, 15
      %s178 = smul.addr %s177, 4
      %s179 = scalar_lea.vmem %s2, %s178
      %s180 = smul.u32 8, %s15
      %p181 = scmp.lt.s32.totalorder %s15, 1
      %s182 = scalar_select %p181, %s15, 1
      %s183 = smul.addr %s182, 8
      %s184 = scalar_lea.vmem %s3, %s183
      %v185 = vld [vmem:[%s173] sm:$0xf]
      %v186 = vld [vmem:[%s173 + $0x4] sm:$0xf]
      %v187 = vld [vmem:[%s173 + $0x8] sm:$0xf]
      %v188 = vld [vmem:[%s173 + $0xc] sm:$0xf]
      %v189 = vld [vmem:[%s173 + $0x10] sm:$0xf]
      %v190 = vld [vmem:[%s173 + $0x14] sm:$0xf]
      %v191 = vld [vmem:[%s173 + $0x18] sm:$0xf]
      %v192 = vld [vmem:[%s173 + $0x1c] sm:$0xf]
      %v193 = vld [vmem:[%s1] sm:$0xf]
      %v194 = vld [vmem:[%s1 + $0x4] sm:$0xf]
      %v195 = vld [vmem:[%s1 + $0x8] sm:$0xf]
      %v196 = vld [vmem:[%s1 + $0xc] sm:$0xf]
      %v197 = vld [vmem:[%s1 + $0x10] sm:$0xf]
      %v198 = vld [vmem:[%s1 + $0x14] sm:$0xf]
      %v199 = vld [vmem:[%s1 + $0x18] sm:$0xf]
      %v200 = vld [vmem:[%s1 + $0x1c] sm:$0xf]
      %v201 = vld [vmem:[%s1 + $0x20] sm:$0xf]
      %v202 = vld [vmem:[%s1 + $0x24] sm:$0xf]
      %v203 = vld [vmem:[%s1 + $0x28] sm:$0xf]
      %v204 = vld [vmem:[%s1 + $0x2c] sm:$0xf]
      %v205 = vld [vmem:[%s1 + $0x30] sm:$0xf]
      %v206 = vld [vmem:[%s1 + $0x34] sm:$0xf]
      %v207 = vld [vmem:[%s1 + $0x38] sm:$0xf]
      %v208 = vld [vmem:[%s1 + $0x3c] sm:$0xf]
      %v217 = vunpack.c.l.b16 %v185
      %v218 = vunpack.c.l.b16 %v186
      %v219 = vunpack.c.l.b16 %v187
      %v220 = vunpack.c.l.b16 %v188
      %v221 = vunpack.c.l.b16 %v189
      %v222 = vunpack.c.l.b16 %v190
      %v223 = vunpack.c.l.b16 %v191
      %v224 = vunpack.c.l.b16 %v192
      %v225 = vpack.c.b16 %v218, %v217
      %v226 = vpack.c.b16 %v220, %v219
      %v227 = vpack.c.b16 %v222, %v221
      %v228 = vpack.c.b16 %v224, %v223
      %v249 = vunpack.c.l.b16 %v193
      %v250 = vunpack.c.l.b16 %v194
      %v251 = vunpack.c.l.b16 %v195
      %v252 = vunpack.c.l.b16 %v196
      %v253 = vunpack.c.l.b16 %v197
      %v254 = vunpack.c.l.b16 %v198
      %v255 = vunpack.c.l.b16 %v199
      %v256 = vunpack.c.l.b16 %v200
      %v257 = vunpack.c.l.b16 %v201
      %v258 = vunpack.c.l.b16 %v202
      %v259 = vunpack.c.l.b16 %v203
      %v260 = vunpack.c.l.b16 %v204
      %v261 = vunpack.c.l.b16 %v205
      %v262 = vunpack.c.l.b16 %v206
      %v263 = vunpack.c.l.b16 %v207
      %v264 = vunpack.c.l.b16 %v208
      %v265 = vpack.c.b16 %v250, %v249
      %v266 = vpack.c.b16 %v252, %v251
      %v267 = vpack.c.b16 %v254, %v253
      %v268 = vpack.c.b16 %v256, %v255
      %v269 = vpack.c.b16 %v258, %v257
      %v270 = vpack.c.b16 %v260, %v259
      %v271 = vpack.c.b16 %v262, %v261
      %v272 = vpack.c.b16 %v264, %v263
      %281 = vmatpush.bf16.msra.mxu0 %v272
      %282 = vmatpush.bf16.msra.mxu0 %v271
      %283 = vmatpush.bf16.msra.mxu0 %v270
      %284 = vmatpush.bf16.msra.mxu0 %v269
      %285 = vmatpush.bf16.msra.mxu0 %v268
      %286 = vmatpush.bf16.msra.mxu0 %v267
      %287 = vmatpush.bf16.msra.mxu0 %v266
      %288 = vmatpush.bf16.msra.mxu0 %v265
      %289 = vmatmul.bf16.gmra.mxu0 %v225
      %v290 = vpop.f32.mrf.mxu0
      %v291 = vadd.f32 0.0, %v290
      %v292 = vpop.f32.mrf.mxu0
      %v293 = vadd.f32 0.0, %v292
      %294 = vmatmul.bf16.gmra.mxu0 %v226
      %v295 = vpop.f32.mrf.mxu0
      %v296 = vadd.f32 0.0, %v295
      %v297 = vpop.f32.mrf.mxu0
      %v298 = vadd.f32 0.0, %v297
      %299 = vmatmul.bf16.gmra.mxu0 %v227
      %v300 = vpop.f32.mrf.mxu0
      %v301 = vadd.f32 0.0, %v300
      %v302 = vpop.f32.mrf.mxu0
      %v303 = vadd.f32 0.0, %v302
      %304 = vmatmul.bf16.gmra.mxu0 %v228
      %v305 = vpop.f32.mrf.mxu0
      %v306 = vadd.f32 0.0, %v305
      %v307 = vpop.f32.mrf.mxu0
      %v308 = vadd.f32 0.0, %v307
      %309 = vdwg.mxu0
      %v310 = vpack.c.bf16 %v291, %v291
      %v311 = vpack.c.bf16 %v293, %v293
      %v312 = vpack.c.bf16 %v296, %v296
      %v313 = vpack.c.bf16 %v298, %v298
      %v314 = vpack.c.bf16 %v301, %v301
      %v315 = vpack.c.bf16 %v303, %v303
      %v316 = vpack.c.bf16 %v306, %v306
      %v317 = vpack.c.bf16 %v308, %v308
      %318 = vst [vmem:[%s179] sm:$0xf] %v310
      %319 = vst [vmem:[%s179 + $0x4] sm:$0xf] %v311
      %320 = vst [vmem:[%s179 + $0x8] sm:$0xf] %v312
      %321 = vst [vmem:[%s179 + $0xc] sm:$0xf] %v313
      %322 = vst [vmem:[%s179 + $0x10] sm:$0xf] %v314
      %323 = vst [vmem:[%s179 + $0x14] sm:$0xf] %v315
      %324 = vst [vmem:[%s179 + $0x18] sm:$0xf] %v316
      %325 = vst [vmem:[%s179 + $0x1c] sm:$0xf] %v317
      %v326 = vadd.f32 %v291, %v293
      %v327 = vadd.f32 %v326, %v296
      %v328 = vadd.f32 %v327, %v298
      %v329 = vadd.f32 %v328, %v301
      %v330 = vadd.f32 %v329, %v303
      %v331 = vadd.f32 %v330, %v306
      %v332 = vadd.f32 %v331, %v308
      %v333 = vrot.slane %v332, 4
      %v334 = vadd.f32 %v332, %v333
      %v335 = vrot.slane %v334, 2
      %v336 = vadd.f32 %v334, %v335
      %v337 = vrot.slane %v336, 1
      %v338 = vadd.f32 %v336, %v337
      %v339 = vmul.f32 %v291, %v291
      %v340 = vmul.f32 %v293, %v293
      %v341 = vmul.f32 %v296, %v296
      %v342 = vmul.f32 %v298, %v298
      %v343 = vmul.f32 %v301, %v301
      %v344 = vmul.f32 %v303, %v303
      %v345 = vmul.f32 %v306, %v306
      %v346 = vmul.f32 %v308, %v308
      %v347 = vadd.f32 %v339, %v340
      %v348 = vadd.f32 %v347, %v341
      %v349 = vadd.f32 %v348, %v342
      %v350 = vadd.f32 %v349, %v343
      %v351 = vadd.f32 %v350, %v344
      %v352 = vadd.f32 %v351, %v345
      %v353 = vadd.f32 %v352, %v346
      %v354 = vrot.slane %v353, 4
      %v355 = vadd.f32 %v353, %v354
      %v356 = vrot.slane %v355, 2
      %v357 = vadd.f32 %v355, %v356
      %v358 = vrot.slane %v357, 1
      %v359 = vadd.f32 %v357, %v358
      %v360 = vlaneseq
      %v361 = vshrl.u32 %v360, 7
      %vm362 = vcmp.eq.s32.totalorder %v361, 0
      %vm363 = vcmp.eq.s32.totalorder %v361, 1
      %v364 = vsel %vm363, %v359, 0.0
      %v365 = vsel %vm362, %v338, %v364
      %366 = vst [vmem:[%s184] sm:$0xff] %v365
      %s367 = smul.u32 8, %s15
      %p368 = scmp.lt.s32.totalorder %s367, 15
      %s369 = scalar_select %p368, %s367, 15
      %s370 = smul.addr %s369, 4
      %s371 = scalar_lea.vmem %s2, %s370
      %p372 = scmp.lt.s32.totalorder %s15, 1
      %s373 = scalar_select %p372, %s15, 1
      %s374 = smul.addr %s373, 8
      %s375 = scalar_lea.vmem %s3, %s374
      // Predicated region
      $region29: #{basic_block_forward.8} parent=27 // pred_check
        %p376 = pneg %p80
      $region30: #{basic_block_forward.8} parent=27 // pred_check_branch
        %378 = sbr.rel (%p376) target = $region32
      $region31: #{basic_block_forward.8} parent=27 // pred_region
        %s379 = smul.u32 8, %s15
      $region32: #{basic_block_forward.8} parent=27 // pred_fallthru
        _
      // Predicated region
      $region33: #{basic_block_forward.8} parent=27 // pred_check
        %p380 = pneg %p106
      $region34: #{basic_block_forward.8} parent=27 // pred_check_branch
        %382 = sbr.rel (%p380) target = $region36
      $region35: #{basic_block_forward.8} parent=27 // pred_region
        _
      $region36: #{basic_block_forward.8} parent=27 // pred_fallthru
        _
    $region28: #{basic_block_forward.8} parent=5 // pred_fallthru
      _
    %p383 = scmp.le.s32.totalorder 2, %s10
    // Predicated region
    $region37: #{basic_block_forward.8} parent=5 // pred_check
      %p384 = pneg %p383
    $region38: #{basic_block_forward.8} parent=5 // pred_check_branch
      %386 = sbr.rel (%p384) target = $region40
    $region39: #{basic_block_forward.8} parent=5 // pred_region
      %s387 = ssub.s32 %s10, 2
      // Predicated region
      $region41: #{basic_block_forward.8} parent=39 // pred_check
        %p388 = pneg %p86
      $region42: #{basic_block_forward.8} parent=39 // pred_check_branch
        %390 = sbr.rel (%p388) target = $region44
      $region43: #{basic_block_forward.8} parent=39 // pred_region
        %s391 = smul.u32 8, %s16
        %p392 = scmp.lt.s32.totalorder %s391, 15
        %s393 = scalar_select %p392, %s391, 15
        %s394 = smul.addr %s393, 4
        %s395 = scalar_lea.vmem %s2, %s394
      $region44: #{basic_block_forward.8} parent=39 // pred_fallthru
        _
      // Predicated region
      $region45: #{basic_block_forward.8} parent=39 // pred_check
        %p396 = pneg %p112
      $region46: #{basic_block_forward.8} parent=39 // pred_check_branch
        %398 = sbr.rel (%p396) target = $region48
      $region47: #{basic_block_forward.8} parent=39 // pred_region
        %p399 = scmp.lt.s32.totalorder %s16, 1
        %s400 = scalar_select %p399, %s16, 1
        %s401 = smul.addr %s400, 8
        %s402 = scalar_lea.vmem %s3, %s401
      $region48: #{basic_block_forward.8} parent=39 // pred_fallthru
        _
    $region40: #{basic_block_forward.8} parent=5 // pred_fallthru
      _
  $region6: #{basic_block_forward.8} parent=0 // loop_footer
    %s14 = sadd.s32 1, %s10
  $region7: #{basic_block_forward.8} parent=0 // loop_footer_branch
    %9 = sbr.rel target = $region3
  $region8: #{basic_block_forward.8} parent=0 // loop_exit
    _

// kernel: basic_block_forward.7
$region0: #{basic_block_forward.7}
  #allocation0 [shape = 'u32[]', space=smem, size = 0x4, offset = 0x4, fixed_abs, tag = 'smem constant byte address 0x4 - core index']
  #allocation1 [shape = 'u32[72,128]{1,0:T(1,128)}', space=vmem, size = 0x9000, scoped, tag = 'internal scratch']
  %s0 = inlined_call_operand.vmem [shape: bf16[128,128], index: 0, kind: input, shape index: {}]
  %s1 = inlined_call_operand.vmem [shape: f32[1,128], index: 1, kind: input, shape index: {}]
  %s2 = inlined_call_operand.vmem [shape: f32[1,128], index: 2, kind: input, shape index: {}]
  %s3 = inlined_call_operand.vmem [shape: bf16[128,128], index: 3, kind: output, shape index: {}]
  %s4 = sld [smem:[#allocation0]]
  $region45: #{basic_block_forward.7} parent=0
    _
  %s6 = ssub.s32 1, %s4
  %s7 = scalar_select 0, %s6, %s4
  loop: start=0, step=1, limit=4
  $region2: #{basic_block_forward.7} parent=0 // loop_pre_header
    _
  $region3: #{basic_block_forward.7} parent=0 // loop_header
    %s9 = sphi 0, %s13
    %p10 = scmp.ge.s32.totalorder %s9, 4
    %s19 = sphi 0, %s21
    %s22 = sphi 0, %s19
    %s23 = sphi 0, %s22
    %s39 = sphi 0, %s23
    %s43 = sphi 0, %s43
    %s45 = sphi 0, %s43
    %s46 = sphi 0, %s45
    %s60 = sphi 0, %s46
    %s64 = sphi 0, %s64
    %s66 = sphi 0, %s64
    %s67 = sphi 0, %s66
    %s81 = sphi 0, %s67
    %s87 = sphi 0, %s89
    %s90 = sphi 0, %s87
    %s91 = sphi 0, %s90
    %s107 = sphi 0, %s91
  $region4: #{basic_block_forward.7} parent=0 // loop_header_branch
    %12 = sbr.rel (%p10) target = $region8
  $region5: #{basic_block_forward.7} parent=0 // loop_body
    %s14 = ssub.s32 %s9, 1
    %s15 = ssub.s32 %s9, 2
    %s16 = sadd.s32 %s9, 1
    %s17 = ssub.s32 %s9, %s16
    %p18 = scmp.eq.s32.totalorder %s17, 0
    %s20 = sadd.s32 %s19, 1
    %s21 = scalar_select %p18, %s19, %s20
    %p24 = pneg %p18
    %p25 = scmp.eq.s32.totalorder %s9, 1
    %p26 = por %p24, %p25
    %p27 = scmp.ne.s32.totalorder %s19, %s22
    %p28 = scmp.eq.s32.totalorder %s9, 0
    %p29 = por %p27, %p28
    %p30 = scmp.ne.s32.totalorder %s19, %s22
    %p31 = scmp.eq.s32.totalorder %s14, 1
    %p32 = por %p30, %p31
    %p33 = scmp.ne.s32.totalorder %s22, %s23
    %p34 = scmp.eq.s32.totalorder %s14, 0
    %p35 = por %p33, %p34
    %p36 = scmp.ne.s32.totalorder %s22, %s23
    %p37 = scmp.eq.s32.totalorder %s15, 1
    %p38 = por %p36, %p37
    %p40 = scmp.ne.s32.totalorder %s23, %s39
    %p41 = scmp.eq.s32.totalorder %s15, 0
    %p42 = por %p40, %p41
    %s44 = sadd.s32 %s43, 1
    %p47 = scmp.eq.s32.totalorder %s9, 1
    %p48 = scmp.ne.s32.totalorder %s43, %s45
    %p49 = scmp.eq.s32.totalorder %s9, 0
    %p50 = por %p48, %p49
    %p51 = scmp.ne.s32.totalorder %s43, %s45
    %p52 = scmp.eq.s32.totalorder %s14, 1
    %p53 = por %p51, %p52
    %p54 = scmp.ne.s32.totalorder %s45, %s46
    %p55 = scmp.eq.s32.totalorder %s14, 0
    %p56 = por %p54, %p55
    %p57 = scmp.ne.s32.totalorder %s45, %s46
    %p58 = scmp.eq.s32.totalorder %s15, 1
    %p59 = por %p57, %p58
    %p61 = scmp.ne.s32.totalorder %s46, %s60
    %p62 = scmp.eq.s32.totalorder %s15, 0
    %p63 = por %p61, %p62
    %s65 = sadd.s32 %s64, 1
    %p68 = scmp.eq.s32.totalorder %s9, 1
    %p69 = scmp.ne.s32.totalorder %s64, %s66
    %p70 = scmp.eq.s32.totalorder %s9, 0
    %p71 = por %p69, %p70
    %p72 = scmp.ne.s32.totalorder %s64, %s66
    %p73 = scmp.eq.s32.totalorder %s14, 1
    %p74 = por %p72, %p73
    %p75 = scmp.ne.s32.totalorder %s66, %s67
    %p76 = scmp.eq.s32.totalorder %s14, 0
    %p77 = por %p75, %p76
    %p78 = scmp.ne.s32.totalorder %s66, %s67
    %p79 = scmp.eq.s32.totalorder %s15, 1
    %p80 = por %p78, %p79
    %p82 = scmp.ne.s32.totalorder %s67, %s81
    %p83 = scmp.eq.s32.totalorder %s15, 0
    %p84 = por %p82, %p83
    %s85 = ssub.s32 %s9, %s16
    %p86 = scmp.eq.s32.totalorder %s85, 0
    %s88 = sadd.s32 %s87, 1
    %s89 = scalar_select %p86, %s87, %s88
    %p92 = pneg %p86
    %p93 = scmp.eq.s32.totalorder %s9, 1
    %p94 = por %p92, %p93
    %p95 = scmp.ne.s32.totalorder %s87, %s90
    %p96 = scmp.eq.s32.totalorder %s9, 0
    %p97 = por %p95, %p96
    %p98 = scmp.ne.s32.totalorder %s87, %s90
    %p99 = scmp.eq.s32.totalorder %s14, 1
    %p100 = por %p98, %p99
    %p101 = scmp.ne.s32.totalorder %s90, %s91
    %p102 = scmp.eq.s32.totalorder %s14, 0
    %p103 = por %p101, %p102
    %p104 = scmp.ne.s32.totalorder %s90, %s91
    %p105 = scmp.eq.s32.totalorder %s15, 1
    %p106 = por %p104, %p105
    %p108 = scmp.ne.s32.totalorder %s91, %s107
    %p109 = scmp.eq.s32.totalorder %s15, 0
    %p110 = por %p108, %p109
    %p111 = scmp.le.s32.totalorder 1, %s9
    %p112 = scmp.lt.s32.totalorder %s9, 3
    %p113 = pnand %p111, %p112
    %p114 = pneg %p113
    // Predicated region
    $region9: #{basic_block_forward.7} parent=5 // pred_check
      _
    $region10: #{basic_block_forward.7} parent=5 // pred_check_branch
      %116 = sbr.rel (%p113) target = $region12
    $region11: #{basic_block_forward.7} parent=5 // pred_region
      %s117 = ssub.s32 %s9, 1
      // Predicated region
      $region13: #{basic_block_forward.7} parent=11 // pred_check
        %p118 = pneg %p56
      $region14: #{basic_block_forward.7} parent=11 // pred_check_branch
        %120 = sbr.rel (%p118) target = $region16
      $region15: #{basic_block_forward.7} parent=11 // pred_region
        _
      $region16: #{basic_block_forward.7} parent=11 // pred_fallthru
        _
      // Predicated region
      $region17: #{basic_block_forward.7} parent=11 // pred_check
        %p121 = pneg %p77
      $region18: #{basic_block_forward.7} parent=11 // pred_check_branch
        %123 = sbr.rel (%p121) target = $region20
      $region19: #{basic_block_forward.7} parent=11 // pred_region
        _
      $region20: #{basic_block_forward.7} parent=11 // pred_fallthru
        _
    $region12: #{basic_block_forward.7} parent=5 // pred_fallthru
      _
    %p124 = scmp.lt.s32.totalorder %s9, 2
    // Predicated region
    $region21: #{basic_block_forward.7} parent=5 // pred_check
      %p125 = pneg %p124
    $region22: #{basic_block_forward.7} parent=5 // pred_check_branch
      %127 = sbr.rel (%p125) target = $region24
    $region23: #{basic_block_forward.7} parent=5 // pred_region
      // Predicated region
      $region25: #{basic_block_forward.7} parent=23 // pred_check
        %p128 = pneg %p29
      $region26: #{basic_block_forward.7} parent=23 // pred_check_branch
        %130 = sbr.rel (%p128) target = $region28
      $region27: #{basic_block_forward.7} parent=23 // pred_region
        %s131 = smul.u32 8, %s9
        %p132 = scmp.lt.s32.totalorder %s131, 15
        %s133 = scalar_select %p132, %s131, 15
        %s134 = smul.addr %s133, 4
        %s135 = scalar_lea.vmem %s0, %s134
        %s136 = smul.u32 8, %s9
      $region28: #{basic_block_forward.7} parent=23 // pred_fallthru
        _
    $region24: #{basic_block_forward.7} parent=5 // pred_fallthru
      _
    %p137 = scmp.le.s32.totalorder 1, %s9
    %p138 = scmp.lt.s32.totalorder %s9, 3
    %p139 = pnand %p137, %p138
    %p140 = pneg %p139
    // Predicated region
    $region29: #{basic_block_forward.7} parent=5 // pred_check
      _
    $region30: #{basic_block_forward.7} parent=5 // pred_check_branch
      %142 = sbr.rel (%p139) target = $region32
    $region31: #{basic_block_forward.7} parent=5 // pred_region
      %s143 = ssub.s32 %s9, 1
      %s144 = smul.u32 8, %s14
      %p145 = scmp.lt.s32.totalorder %s144, 15
      %s146 = scalar_select %p145, %s144, 15
      %s147 = smul.addr %s146, 4
      %s148 = scalar_lea.vmem %s0, %s147
      %p149 = pneg %p35
      %p150 = pneg %p32
      %p151 = pneg %p56
      %p152 = pneg %p53
      %p153 = pneg %p77
      %p154 = pneg %p74
      %p155 = pneg %p103
      %p156 = pneg %p100
      %s157 = smul.u32 8, %s14
      %p158 = scmp.lt.s32.totalorder %s157, 15
      %s159 = scalar_select %p158, %s157, 15
      %s160 = smul.addr %s159, 4
      %s161 = scalar_lea.vmem %s3, %s160
      %s162 = smul.u32 8, %s14
      %p163 = scmp.lt.s32.totalorder %s162, 15
      %s164 = scalar_select %p163, %s162, 15
      %s165 = smul.addr %s164, 4
      %s166 = scalar_lea.vmem %s0, %s165
      %s167 = smul.u32 8, %s14
      %s168 = smul.u32 8, %s14
      %p169 = scmp.lt.s32.totalorder %s168, 15
      %s170 = scalar_select %p169, %s168, 15
      %s171 = smul.addr %s170, 4
      %s172 = scalar_lea.vmem %s3, %s171
      %s173 = smul.u32 8, %s14
      %v174 = vld [vmem:[%s166] sm:$0xf]
      %v175 = vld [vmem:[%s166 + $0x4] sm:$0xf]
      %v176 = vld [vmem:[%s166 + $0x8] sm:$0xf]
      %v177 = vld [vmem:[%s166 + $0xc] sm:$0xf]
      %v178 = vld [vmem:[%s166 + $0x10] sm:$0xf]
      %v179 = vld [vmem:[%s166 + $0x14] sm:$0xf]
      %v180 = vld [vmem:[%s166 + $0x18] sm:$0xf]
      %v181 = vld [vmem:[%s166 + $0x1c] sm:$0xf]
      %v182 = vunpack.c.l.bf16 %v174
      %v183 = vunpack.c.l.bf16 %v175
      %v184 = vunpack.c.l.bf16 %v176
      %v185 = vunpack.c.l.bf16 %v177
      %v186 = vunpack.c.l.bf16 %v178
      %v187 = vunpack.c.l.bf16 %v179
      %v188 = vunpack.c.l.bf16 %v180
      %v189 = vunpack.c.l.bf16 %v181
      %v190 = vld [vmem:[%s1] sm:$0x1]
      %v192 = vperm.slane %v190, 0
      %v194 = vmul.f32 %v182, %v192
      %v195 = vmul.f32 %v183, %v192
      %v196 = vmul.f32 %v184, %v192
      %v197 = vmul.f32 %v185, %v192
      %v198 = vmul.f32 %v186, %v192
      %v199 = vmul.f32 %v187, %v192
      %v200 = vmul.f32 %v188, %v192
      %v201 = vmul.f32 %v189, %v192
      %v202 = vld [vmem:[%s2] sm:$0x1]
      %v204 = vperm.slane %v202, 0
      %v206 = vadd.f32 %v194, %v204
      %v207 = vadd.f32 %v195, %v204
      %v208 = vadd.f32 %v196, %v204
      %v209 = vadd.f32 %v197, %v204
      %v210 = vadd.f32 %v198, %v204
      %v211 = vadd.f32 %v199, %v204
      %v212 = vadd.f32 %v200, %v204
      %v213 = vadd.f32 %v201, %v204
      %v214 = vpack.c.bf16 %v206, %v206
      %v215 = vpack.c.bf16 %v207, %v207
      %v216 = vpack.c.bf16 %v208, %v208
      %v217 = vpack.c.bf16 %v209, %v209
      %v218 = vpack.c.bf16 %v210, %v210
      %v219 = vpack.c.bf16 %v211, %v211
      %v220 = vpack.c.bf16 %v212, %v212
      %v221 = vpack.c.bf16 %v213, %v213
      %222 = vst [vmem:[%s172] sm:$0xf] %v214
      %223 = vst [vmem:[%s172 + $0x4] sm:$0xf] %v215
      %224 = vst [vmem:[%s172 + $0x8] sm:$0xf] %v216
      %225 = vst [vmem:[%s172 + $0xc] sm:$0xf] %v217
      %226 = vst [vmem:[%s172 + $0x10] sm:$0xf] %v218
      %227 = vst [vmem:[%s172 + $0x14] sm:$0xf] %v219
      %228 = vst [vmem:[%s172 + $0x18] sm:$0xf] %v220
      %229 = vst [vmem:[%s172 + $0x1c] sm:$0xf] %v221
      %s230 = smul.u32 8, %s14
      %p231 = scmp.lt.s32.totalorder %s230, 15
      %s232 = scalar_select %p231, %s230, 15
      %s233 = smul.addr %s232, 4
      %s234 = scalar_lea.vmem %s3, %s233
      // Predicated region
      $region33: #{basic_block_forward.7} parent=31 // pred_check
        %p235 = pneg %p100
      $region34: #{basic_block_forward.7} parent=31 // pred_check_branch
        %237 = sbr.rel (%p235) target = $region36
      $region35: #{basic_block_forward.7} parent=31 // pred_region
        %s238 = smul.u32 8, %s14
      $region36: #{basic_block_forward.7} parent=31 // pred_fallthru
        _
    $region32: #{basic_block_forward.7} parent=5 // pred_fallthru
      _
    %p239 = scmp.le.s32.totalorder 2, %s9
    // Predicated region
    $region37: #{basic_block_forward.7} parent=5 // pred_check
      %p240 = pneg %p239
    $region38: #{basic_block_forward.7} parent=5 // pred_check_branch
      %242 = sbr.rel (%p240) target = $region40
    $region39: #{basic_block_forward.7} parent=5 // pred_region
      %s243 = ssub.s32 %s9, 2
      // Predicated region
      $region41: #{basic_block_forward.7} parent=39 // pred_check
        %p244 = pneg %p106
      $region42: #{basic_block_forward.7} parent=39 // pred_check_branch
        %246 = sbr.rel (%p244) target = $region44
      $region43: #{basic_block_forward.7} parent=39 // pred_region
        %s247 = smul.u32 8, %s15
        %p248 = scmp.lt.s32.totalorder %s247, 15
        %s249 = scalar_select %p248, %s247, 15
        %s250 = smul.addr %s249, 4
        %s251 = scalar_lea.vmem %s3, %s250
      $region44: #{basic_block_forward.7} parent=39 // pred_fallthru
        _
    $region40: #{basic_block_forward.7} parent=5 // pred_fallthru
      _
  $region6: #{basic_block_forward.7} parent=0 // loop_footer
    %s13 = sadd.s32 1, %s9
  $region7: #{basic_block_forward.7} parent=0 // loop_footer_branch
    %8 = sbr.rel target = $region3
  $region8: #{basic_block_forward.7} parent=0 // loop_exit
    _

// kernel: basic_block_forward.11
$region0: #{basic_block_forward.11}
  #allocation0 [shape = 'u32[]', space=smem, size = 0x4, offset = 0x4, fixed_abs, tag = 'smem constant byte address 0x4 - core index']
  #allocation1 [shape = 'u32[72,128]{1,0:T(1,128)}', space=vmem, size = 0x9000, scoped, tag = 'internal scratch']
  %s0 = inlined_call_operand.vmem [shape: bf16[128,128], index: 0, kind: input, shape index: {}]
  %s1 = inlined_call_operand.vmem [shape: f32[1,128], index: 1, kind: input, shape index: {}]
  %s2 = inlined_call_operand.vmem [shape: f32[1,128], index: 2, kind: input, shape index: {}]
  %s3 = inlined_call_operand.vmem [shape: bf16[128,128], index: 3, kind: input, shape index: {}]
  %s4 = inlined_call_operand.vmem [shape: f32[128,128], index: 4, kind: output, shape index: {}]
  %s5 = sld [smem:[#allocation0]]
  $region49: #{basic_block_forward.11} parent=0
    _
  %s7 = ssub.s32 1, %s5
  %s8 = scalar_select 0, %s7, %s5
  loop: start=0, step=1, limit=4
  $region2: #{basic_block_forward.11} parent=0 // loop_pre_header
    _
  $region3: #{basic_block_forward.11} parent=0 // loop_header
    %s10 = sphi 0, %s14
    %p11 = scmp.ge.s32.totalorder %s10, 4
    %s20 = sphi 0, %s22
    %s23 = sphi 0, %s20
    %s24 = sphi 0, %s23
    %s40 = sphi 0, %s24
    %s44 = sphi 0, %s44
    %s46 = sphi 0, %s44
    %s47 = sphi 0, %s46
    %s61 = sphi 0, %s47
    %s65 = sphi 0, %s65
    %s67 = sphi 0, %s65
    %s68 = sphi 0, %s67
    %s82 = sphi 0, %s68
    %s88 = sphi 0, %s90
    %s91 = sphi 0, %s88
    %s92 = sphi 0, %s91
    %s108 = sphi 0, %s92
    %s114 = sphi 0, %s116
    %s117 = sphi 0, %s114
    %s118 = sphi 0, %s117
    %s134 = sphi 0, %s118
  $region4: #{basic_block_forward.11} parent=0 // loop_header_branch
    %13 = sbr.rel (%p11) target = $region8
  $region5: #{basic_block_forward.11} parent=0 // loop_body
    %s15 = ssub.s32 %s10, 1
    %s16 = ssub.s32 %s10, 2
    %s17 = sadd.s32 %s10, 1
    %s18 = ssub.s32 %s10, %s17
    %p19 = scmp.eq.s32.totalorder %s18, 0
    %s21 = sadd.s32 %s20, 1
    %s22 = scalar_select %p19, %s20, %s21
    %p25 = pneg %p19
    %p26 = scmp.eq.s32.totalorder %s10, 1
    %p27 = por %p25, %p26
    %p28 = scmp.ne.s32.totalorder %s20, %s23
    %p29 = scmp.eq.s32.totalorder %s10, 0
    %p30 = por %p28, %p29
    %p31 = scmp.ne.s32.totalorder %s20, %s23
    %p32 = scmp.eq.s32.totalorder %s15, 1
    %p33 = por %p31, %p32
    %p34 = scmp.ne.s32.totalorder %s23, %s24
    %p35 = scmp.eq.s32.totalorder %s15, 0
    %p36 = por %p34, %p35
    %p37 = scmp.ne.s32.totalorder %s23, %s24
    %p38 = scmp.eq.s32.totalorder %s16, 1
    %p39 = por %p37, %p38
    %p41 = scmp.ne.s32.totalorder %s24, %s40
    %p42 = scmp.eq.s32.totalorder %s16, 0
    %p43 = por %p41, %p42
    %s45 = sadd.s32 %s44, 1
    %p48 = scmp.eq.s32.totalorder %s10, 1
    %p49 = scmp.ne.s32.totalorder %s44, %s46
    %p50 = scmp.eq.s32.totalorder %s10, 0
    %p51 = por %p49, %p50
    %p52 = scmp.ne.s32.totalorder %s44, %s46
    %p53 = scmp.eq.s32.totalorder %s15, 1
    %p54 = por %p52, %p53
    %p55 = scmp.ne.s32.totalorder %s46, %s47
    %p56 = scmp.eq.s32.totalorder %s15, 0
    %p57 = por %p55, %p56
    %p58 = scmp.ne.s32.totalorder %s46, %s47
    %p59 = scmp.eq.s32.totalorder %s16, 1
    %p60 = por %p58, %p59
    %p62 = scmp.ne.s32.totalorder %s47, %s61
    %p63 = scmp.eq.s32.totalorder %s16, 0
    %p64 = por %p62, %p63
    %s66 = sadd.s32 %s65, 1
    %p69 = scmp.eq.s32.totalorder %s10, 1
    %p70 = scmp.ne.s32.totalorder %s65, %s67
    %p71 = scmp.eq.s32.totalorder %s10, 0
    %p72 = por %p70, %p71
    %p73 = scmp.ne.s32.totalorder %s65, %s67
    %p74 = scmp.eq.s32.totalorder %s15, 1
    %p75 = por %p73, %p74
    %p76 = scmp.ne.s32.totalorder %s67, %s68
    %p77 = scmp.eq.s32.totalorder %s15, 0
    %p78 = por %p76, %p77
    %p79 = scmp.ne.s32.totalorder %s67, %s68
    %p80 = scmp.eq.s32.totalorder %s16, 1
    %p81 = por %p79, %p80
    %p83 = scmp.ne.s32.totalorder %s68, %s82
    %p84 = scmp.eq.s32.totalorder %s16, 0
    %p85 = por %p83, %p84
    %s86 = ssub.s32 %s10, %s17
    %p87 = scmp.eq.s32.totalorder %s86, 0
    %s89 = sadd.s32 %s88, 1
    %s90 = scalar_select %p87, %s88, %s89
    %p93 = pneg %p87
    %p94 = scmp.eq.s32.totalorder %s10, 1
    %p95 = por %p93, %p94
    %p96 = scmp.ne.s32.totalorder %s88, %s91
    %p97 = scmp.eq.s32.totalorder %s10, 0
    %p98 = por %p96, %p97
    %p99 = scmp.ne.s32.totalorder %s88, %s91
    %p100 = scmp.eq.s32.totalorder %s15, 1
    %p101 = por %p99, %p100
    %p102 = scmp.ne.s32.totalorder %s91, %s92
    %p103 = scmp.eq.s32.totalorder %s15, 0
    %p104 = por %p102, %p103
    %p105 = scmp.ne.s32.totalorder %s91, %s92
    %p106 = scmp.eq.s32.totalorder %s16, 1
    %p107 = por %p105, %p106
    %p109 = scmp.ne.s32.totalorder %s92, %s108
    %p110 = scmp.eq.s32.totalorder %s16, 0
    %p111 = por %p109, %p110
    %s112 = ssub.s32 %s10, %s17
    %p113 = scmp.eq.s32.totalorder %s112, 0
    %s115 = sadd.s32 %s114, 1
    %s116 = scalar_select %p113, %s114, %s115
    %p119 = pneg %p113
    %p120 = scmp.eq.s32.totalorder %s10, 1
    %p121 = por %p119, %p120
    %p122 = scmp.ne.s32.totalorder %s114, %s117
    %p123 = scmp.eq.s32.totalorder %s10, 0
    %p124 = por %p122, %p123
    %p125 = scmp.ne.s32.totalorder %s114, %s117
    %p126 = scmp.eq.s32.totalorder %s15, 1
    %p127 = por %p125, %p126
    %p128 = scmp.ne.s32.totalorder %s117, %s118
    %p129 = scmp.eq.s32.totalorder %s15, 0
    %p130 = por %p128, %p129
    %p131 = scmp.ne.s32.totalorder %s117, %s118
    %p132 = scmp.eq.s32.totalorder %s16, 1
    %p133 = por %p131, %p132
    %p135 = scmp.ne.s32.totalorder %s118, %s134
    %p136 = scmp.eq.s32.totalorder %s16, 0
    %p137 = por %p135, %p136
    %p138 = scmp.le.s32.totalorder 1, %s10
    %p139 = scmp.lt.s32.totalorder %s10, 3
    %p140 = pnand %p138, %p139
    %p141 = pneg %p140
    // Predicated region
    $region9: #{basic_block_forward.11} parent=5 // pred_check
      _
    $region10: #{basic_block_forward.11} parent=5 // pred_check_branch
      %143 = sbr.rel (%p140) target = $region12
    $region11: #{basic_block_forward.11} parent=5 // pred_region
      %s144 = ssub.s32 %s10, 1
      // Predicated region
      $region13: #{basic_block_forward.11} parent=11 // pred_check
        %p145 = pneg %p57
      $region14: #{basic_block_forward.11} parent=11 // pred_check_branch
        %147 = sbr.rel (%p145) target = $region16
      $region15: #{basic_block_forward.11} parent=11 // pred_region
        _
      $region16: #{basic_block_forward.11} parent=11 // pred_fallthru
        _
      // Predicated region
      $region17: #{basic_block_forward.11} parent=11 // pred_check
        %p148 = pneg %p78
      $region18: #{basic_block_forward.11} parent=11 // pred_check_branch
        %150 = sbr.rel (%p148) target = $region20
      $region19: #{basic_block_forward.11} parent=11 // pred_region
        _
      $region20: #{basic_block_forward.11} parent=11 // pred_fallthru
        _
    $region12: #{basic_block_forward.11} parent=5 // pred_fallthru
      _
    %p151 = scmp.lt.s32.totalorder %s10, 2
    // Predicated region
    $region21: #{basic_block_forward.11} parent=5 // pred_check
      %p152 = pneg %p151
    $region22: #{basic_block_forward.11} parent=5 // pred_check_branch
      %154 = sbr.rel (%p152) target = $region24
    $region23: #{basic_block_forward.11} parent=5 // pred_region
      // Predicated region
      $region25: #{basic_block_forward.11} parent=23 // pred_check
        %p155 = pneg %p30
      $region26: #{basic_block_forward.11} parent=23 // pred_check_branch
        %157 = sbr.rel (%p155) target = $region28
      $region27: #{basic_block_forward.11} parent=23 // pred_region
        %s158 = smul.u32 8, %s10
        %p159 = scmp.lt.s32.totalorder %s158, 15
        %s160 = scalar_select %p159, %s158, 15
        %s161 = smul.addr %s160, 4
        %s162 = scalar_lea.vmem %s0, %s161
        %s163 = smul.u32 8, %s10
      $region28: #{basic_block_forward.11} parent=23 // pred_fallthru
        _
      // Predicated region
      $region29: #{basic_block_forward.11} parent=23 // pred_check
        %p164 = pneg %p98
      $region30: #{basic_block_forward.11} parent=23 // pred_check_branch
        %166 = sbr.rel (%p164) target = $region32
      $region31: #{basic_block_forward.11} parent=23 // pred_region
        %s167 = smul.u32 8, %s10
        %p168 = scmp.lt.s32.totalorder %s167, 15
        %s169 = scalar_select %p168, %s167, 15
        %s170 = smul.addr %s169, 4
        %s171 = scalar_lea.vmem %s3, %s170
        %s172 = smul.u32 8, %s10
      $region32: #{basic_block_forward.11} parent=23 // pred_fallthru
        _
    $region24: #{basic_block_forward.11} parent=5 // pred_fallthru
      _
    %p173 = scmp.le.s32.totalorder 1, %s10
    %p174 = scmp.lt.s32.totalorder %s10, 3
    %p175 = pnand %p173, %p174
    %p176 = pneg %p175
    // Predicated region
    $region33: #{basic_block_forward.11} parent=5 // pred_check
      _
    $region34: #{basic_block_forward.11} parent=5 // pred_check_branch
      %178 = sbr.rel (%p175) target = $region36
    $region35: #{basic_block_forward.11} parent=5 // pred_region
      %s179 = ssub.s32 %s10, 1
      %s180 = smul.u32 8, %s15
      %p181 = scmp.lt.s32.totalorder %s180, 15
      %s182 = scalar_select %p181, %s180, 15
      %s183 = smul.addr %s182, 4
      %s184 = scalar_lea.vmem %s0, %s183
      %p185 = pneg %p36
      %p186 = pneg %p33
      %p187 = pneg %p57
      %p188 = pneg %p54
      %p189 = pneg %p78
      %p190 = pneg %p75
      %s191 = smul.u32 8, %s15
      %p192 = scmp.lt.s32.totalorder %s191, 15
      %s193 = scalar_select %p192, %s191, 15
      %s194 = smul.addr %s193, 4
      %s195 = scalar_lea.vmem %s3, %s194
      %p196 = pneg %p104
      %p197 = pneg %p101
      %p198 = pneg %p130
      %p199 = pneg %p127
      %s200 = smul.u32 8, %s15
      %p201 = scmp.lt.s32.totalorder %s200, 15
      %s202 = scalar_select %p201, %s200, 15
      %s203 = smul.addr %s202, 8
      %s204 = scalar_lea.vmem %s4, %s203
      %s205 = smul.u32 8, %s15
      %p206 = scmp.lt.s32.totalorder %s205, 15
      %s207 = scalar_select %p206, %s205, 15
      %s208 = smul.addr %s207, 4
      %s209 = scalar_lea.vmem %s0, %s208
      %s210 = smul.u32 8, %s15
      %s211 = smul.u32 8, %s15
      %p212 = scmp.lt.s32.totalorder %s211, 15
      %s213 = scalar_select %p212, %s211, 15
      %s214 = smul.addr %s213, 4
      %s215 = scalar_lea.vmem %s3, %s214
      %s216 = smul.u32 8, %s15
      %s217 = smul.u32 8, %s15
      %p218 = scmp.lt.s32.totalorder %s217, 15
      %s219 = scalar_select %p218, %s217, 15
      %s220 = smul.addr %s219, 8
      %s221 = scalar_lea.vmem %s4, %s220
      %s222 = smul.u32 8, %s15
      %v223 = vld [vmem:[%s209] sm:$0xf]
      %v224 = vld [vmem:[%s209 + $0x4] sm:$0xf]
      %v225 = vld [vmem:[%s209 + $0x8] sm:$0xf]
      %v226 = vld [vmem:[%s209 + $0xc] sm:$0xf]
      %v227 = vld [vmem:[%s209 + $0x10] sm:$0xf]
      %v228 = vld [vmem:[%s209 + $0x14] sm:$0xf]
      %v229 = vld [vmem:[%s209 + $0x18] sm:$0xf]
      %v230 = vld [vmem:[%s209 + $0x1c] sm:$0xf]
      %v231 = vunpack.c.l.bf16 %v223
      %v232 = vunpack.c.l.bf16 %v224
      %v233 = vunpack.c.l.bf16 %v225
      %v234 = vunpack.c.l.bf16 %v226
      %v235 = vunpack.c.l.bf16 %v227
      %v236 = vunpack.c.l.bf16 %v228
      %v237 = vunpack.c.l.bf16 %v229
      %v238 = vunpack.c.l.bf16 %v230
      %v239 = vld [vmem:[%s1] sm:$0x1]
      %v241 = vperm.slane %v239, 0
      %v243 = vmul.f32 %v231, %v241
      %v244 = vmul.f32 %v232, %v241
      %v245 = vmul.f32 %v233, %v241
      %v246 = vmul.f32 %v234, %v241
      %v247 = vmul.f32 %v235, %v241
      %v248 = vmul.f32 %v236, %v241
      %v249 = vmul.f32 %v237, %v241
      %v250 = vmul.f32 %v238, %v241
      %v251 = vld [vmem:[%s2] sm:$0x1]
      %v253 = vperm.slane %v251, 0
      %v255 = vadd.f32 %v243, %v253
      %v256 = vadd.f32 %v244, %v253
      %v257 = vadd.f32 %v245, %v253
      %v258 = vadd.f32 %v246, %v253
      %v259 = vadd.f32 %v247, %v253
      %v260 = vadd.f32 %v248, %v253
      %v261 = vadd.f32 %v249, %v253
      %v262 = vadd.f32 %v250, %v253
      %v263 = vld [vmem:[%s215] sm:$0xf]
      %v264 = vld [vmem:[%s215 + $0x4] sm:$0xf]
      %v265 = vld [vmem:[%s215 + $0x8] sm:$0xf]
      %v266 = vld [vmem:[%s215 + $0xc] sm:$0xf]
      %v267 = vld [vmem:[%s215 + $0x10] sm:$0xf]
      %v268 = vld [vmem:[%s215 + $0x14] sm:$0xf]
      %v269 = vld [vmem:[%s215 + $0x18] sm:$0xf]
      %v270 = vld [vmem:[%s215 + $0x1c] sm:$0xf]
      %v271 = vunpack.c.l.bf16 %v263
      %v272 = vunpack.c.l.bf16 %v264
      %v273 = vunpack.c.l.bf16 %v265
      %v274 = vunpack.c.l.bf16 %v266
      %v275 = vunpack.c.l.bf16 %v267
      %v276 = vunpack.c.l.bf16 %v268
      %v277 = vunpack.c.l.bf16 %v269
      %v278 = vunpack.c.l.bf16 %v270
      %v279 = vadd.f32 %v255, %v271
      %v280 = vadd.f32 %v256, %v272
      %v281 = vadd.f32 %v257, %v273
      %v282 = vadd.f32 %v258, %v274
      %v283 = vadd.f32 %v259, %v275
      %v284 = vadd.f32 %v260, %v276
      %v285 = vadd.f32 %v261, %v277
      %v286 = vadd.f32 %v262, %v278
      %287 = vst [vmem:[%s221] sm:$0xff] %v279
      %288 = vst [vmem:[%s221 + $0x8] sm:$0xff] %v280
      %289 = vst [vmem:[%s221 + $0x10] sm:$0xff] %v281
      %290 = vst [vmem:[%s221 + $0x18] sm:$0xff] %v282
      %291 = vst [vmem:[%s221 + $0x20] sm:$0xff] %v283
      %292 = vst [vmem:[%s221 + $0x28] sm:$0xff] %v284
      %293 = vst [vmem:[%s221 + $0x30] sm:$0xff] %v285
      %294 = vst [vmem:[%s221 + $0x38] sm:$0xff] %v286
      %s295 = smul.u32 8, %s15
      %p296 = scmp.lt.s32.totalorder %s295, 15
      %s297 = scalar_select %p296, %s295, 15
      %s298 = smul.addr %s297, 8
      %s299 = scalar_lea.vmem %s4, %s298
      // Predicated region
      $region37: #{basic_block_forward.11} parent=35 // pred_check
        %p300 = pneg %p127
      $region38: #{basic_block_forward.11} parent=35 // pred_check_branch
        %302 = sbr.rel (%p300) target = $region40
      $region39: #{basic_block_forward.11} parent=35 // pred_region
        %s303 = smul.u32 8, %s15
      $region40: #{basic_block_forward.11} parent=35 // pred_fallthru
        _
    $region36: #{basic_block_forward.11} parent=5 // pred_fallthru
      _
    %p304 = scmp.le.s32.totalorder 2, %s10
    // Predicated region
    $region41: #{basic_block_forward.11} parent=5 // pred_check
      %p305 = pneg %p304
    $region42: #{basic_block_forward.11} parent=5 // pred_check_branch
      %307 = sbr.rel (%p305) target = $region44
    $region43: #{basic_block_forward.11} parent=5 // pred_region
      %s308 = ssub.s32 %s10, 2
      // Predicated region
      $region45: #{basic_block_forward.11} parent=43 // pred_check
        %p309 = pneg %p133
      $region46: #{basic_block_forward.11} parent=43 // pred_check_branch
        %311 = sbr.rel (%p309) target = $region48
      $region47: #{basic_block_forward.11} parent=43 // pred_region
        %s312 = smul.u32 8, %s16
        %p313 = scmp.lt.s32.totalorder %s312, 15
        %s314 = scalar_select %p313, %s312, 15
        %s315 = smul.addr %s314, 8
        %s316 = scalar_lea.vmem %s4, %s315
      $region48: #{basic_block_forward.11} parent=43 // pred_fallthru
        _
    $region44: #{basic_block_forward.11} parent=5 // pred_fallthru
      _
  $region6: #{basic_block_forward.11} parent=0 // loop_footer
    %s14 = sadd.s32 1, %s10
  $region7: #{basic_block_forward.11} parent=0 // loop_footer_branch
    %9 = sbr.rel target = $region3
  $region8: #{basic_block_forward.11} parent=0 // loop_exit
    _

</llo_original>
